<compile_context>
chip_gen: v6e
topology: v6e:2x2x1
jax: 0.10.0
libtpu: 0.0.40
codegen_flags: <defaults>
</compile_context>

<pallas_src>
import jax
import jax.numpy as jnp
from jax.experimental import pallas as pl
from jax.experimental.pallas import tpu as pltpu

IN_FEATURES = 2883
HIDDEN = 70
OUT_FEATURES = 100

# Lane-dense padded dims (multiples of 128).
IN_PAD = 2944    # 23 * 128
HID_PAD = 128
OUT_PAD = 128

TILE_B_MAX = 512  # rows per grid step; ~6 MiB/x-buffer, fits all generations


def _round_up(v, m):
    return ((v + m - 1) // m) * m


def _mlp_kernel(x_ref, w1_ref, b1_ref, w2_ref, b2_ref, o_ref):
    # x_ref : (TILE_B, 2944)   w1_ref: (2944, 128)  b1_ref: (1, 128)
    # w2_ref: (128, 128)       b2_ref: (1, 128)     o_ref : (TILE_B, 128)
    h = jnp.dot(x_ref[...], w1_ref[...],
                preferred_element_type=jnp.float32) + b1_ref[...]
    h = jnp.maximum(h, 0.0)
    # Dropout(p=0.2) is identity at inference time.
    y = jnp.dot(h, w2_ref[...],
                preferred_element_type=jnp.float32) + b2_ref[...]
    o_ref[...] = y.astype(o_ref.dtype)


def neural_net_forward(x, w1, b1, w2, b2):
    """x: (N, 2883) float32, w1: (2883, 70), b1: (70,), w2: (70, 100), b2: (100,)
    -> (N, 100) float32.  Weights are stored pre-transposed (in, out), i.e.
    PyTorch weight.T, so x @ W + b matches nn.Linear exactly."""
    n = x.shape[0]

    # Adaptive tile: single small block for tiny batches, big streamed tiles
    # for large N.  Tile rows must be a multiple of 8 (sublane).
    tile_b = min(TILE_B_MAX, _round_up(max(n, 1), 8))
    n_pad = _round_up(n, tile_b)
    grid = (n_pad // tile_b,)

    # Zero-pad everything to lane-dense shapes (exact for linear + ReLU).
    x_p = jnp.pad(x, ((0, n_pad - n), (0, IN_PAD - IN_FEATURES)))
    w1_p = jnp.pad(w1, ((0, IN_PAD - IN_FEATURES), (0, HID_PAD - HIDDEN)))
    b1_p = jnp.pad(b1, (0, HID_PAD - HIDDEN)).reshape(1, HID_PAD)
    w2_p = jnp.pad(w2, ((0, HID_PAD - HIDDEN), (0, OUT_PAD - OUT_FEATURES)))
    b2_p = jnp.pad(b2, (0, OUT_PAD - OUT_FEATURES)).reshape(1, OUT_PAD)

    cost = pl.CostEstimate(
        flops=2 * n_pad * (IN_PAD * HID_PAD + HID_PAD * OUT_PAD),
        transcendentals=0,
        bytes_accessed=(n_pad * IN_PAD + IN_PAD * HID_PAD + HID_PAD
                        + HID_PAD * OUT_PAD + OUT_PAD
                        + n_pad * OUT_PAD) * 4,
    )

    out_pad = pl.pallas_call(
        _mlp_kernel,
        out_shape=jax.ShapeDtypeStruct((n_pad, OUT_PAD), jnp.float32),
        grid=grid,
        in_specs=[
            # x streams through VMEM one batch tile at a time (double-buffered).
            pl.BlockSpec((tile_b, IN_PAD), lambda i: (i, 0)),
            # Weights / biases: constant block index -> stay VMEM-resident.
            pl.BlockSpec((IN_PAD, HID_PAD), lambda i: (0, 0)),
            pl.BlockSpec((1, HID_PAD), lambda i: (0, 0)),
            pl.BlockSpec((HID_PAD, OUT_PAD), lambda i: (0, 0)),
            pl.BlockSpec((1, OUT_PAD), lambda i: (0, 0)),
        ],
        out_specs=pl.BlockSpec((tile_b, OUT_PAD), lambda i: (i, 0)),
        compiler_params=pltpu.CompilerParams(
            dimension_semantics=("parallel",),
            vmem_limit_bytes=48 * 1024 * 1024,
        ),
        cost_estimate=cost,
    )(x_p, w1_p, b1_p, w2_p, b2_p)

    # Slice the padded batch rows / output lanes back off.
    return out_pad[:n, :OUT_FEATURES]


def init_params(key):
    """Deterministic init mimicking PyTorch Linear default (uniform +/- 1/sqrt(fan_in))."""
    k1, k2, k3, k4 = jax.random.split(key, 4)
    bound1 = 1.0 / jnp.sqrt(IN_FEATURES)
    bound2 = 1.0 / jnp.sqrt(HIDDEN)
    # Weights stored as (in, out) == PyTorch weight.T
    w1 = jax.random.uniform(k1, (IN_FEATURES, HIDDEN), jnp.float32, -bound1, bound1)
    b1 = jax.random.uniform(k2, (HIDDEN,), jnp.float32, -bound1, bound1)
    w2 = jax.random.uniform(k3, (HIDDEN, OUT_FEATURES), jnp.float32, -bound2, bound2)
    b2 = jax.random.uniform(k4, (OUT_FEATURES,), jnp.float32, -bound2, bound2)
    return w1, b1, w2, b2


if __name__ == "__main__":
    key = jax.random.PRNGKey(0)
    kx, kp = jax.random.split(key)

    N = 8  # small batch for the smoke test
    x = jax.random.normal(kx, (N, IN_FEATURES), jnp.float32)
    w1, b1, w2, b2 = init_params(kp)

    out = neural_net_forward(x, w1, b1, w2, b2)
    out = jax.block_until_ready(out)

    # Reference check in plain JAX (same math, eval-mode dropout = identity).
    ref = jnp.maximum(x @ w1 + b1, 0.0) @ w2 + b2
    assert out.shape == (N, OUT_FEATURES)
    assert jnp.allclose(out, ref, atol=1e-4, rtol=1e-4)

    # Also exercise a larger, non-tile-aligned batch through the tiled path.
    N2 = 1030
    x2 = jax.random.normal(kx, (N2, IN_FEATURES), jnp.float32)
    out2 = jax.block_until_ready(neural_net_forward(x2, w1, b1, w2, b2))
    ref2 = jnp.maximum(x2 @ w1 + b1, 0.0) @ w2 + b2
    assert out2.shape == (N2, OUT_FEATURES)
    assert jnp.allclose(out2, ref2, atol=1e-4, rtol=1e-4)

    print("KERNEL_OK")
</pallas_src>

<mosaic_0001>
module attributes {stable_mosaic.version = 11 : i64} {
  func.func @_mlp_kernel(%arg0: i32, %arg1: memref<8x2944xf32, #tpu.memory_space<vmem>>, %arg2: memref<2944x128xf32, #tpu.memory_space<vmem>>, %arg3: memref<1x128xf32, #tpu.memory_space<vmem>>, %arg4: memref<128x128xf32, #tpu.memory_space<vmem>>, %arg5: memref<1x128xf32, #tpu.memory_space<vmem>>, %arg6: memref<8x128xf32, #tpu.memory_space<vmem>>) attributes {dimension_semantics = [#tpu.dimension_semantics<parallel>], iteration_bounds = array<i64: 1>, scalar_prefetch = 0 : i64, scratch_operands = 0 : i64, tpu.core_type = #tpu.core_type<tc>, window_params = [{transform_indices = @transform_0, window_bounds = array<i64: 8, 2944>}, {pipeline_mode = #tpu.pipeline_mode<synchronous>, transform_indices = @transform_1, window_bounds = array<i64: 2944, 128>}, {pipeline_mode = #tpu.pipeline_mode<synchronous>, transform_indices = @transform_2, window_bounds = array<i64: 1, 128>}, {pipeline_mode = #tpu.pipeline_mode<synchronous>, transform_indices = @transform_3, window_bounds = array<i64: 128, 128>}, {pipeline_mode = #tpu.pipeline_mode<synchronous>, transform_indices = @transform_4, window_bounds = array<i64: 1, 128>}, {transform_indices = @transform_5, window_bounds = array<i64: 8, 128>}]} {
    %c0 = arith.constant 0 : index
    %c0_0 = arith.constant 0 : index
    %0 = vector.load %arg1[%c0, %c0_0] : memref<8x2944xf32, #tpu.memory_space<vmem>>, vector<8x2944xf32>
    %c0_1 = arith.constant 0 : index
    %c0_2 = arith.constant 0 : index
    %1 = vector.load %arg2[%c0_1, %c0_2] : memref<2944x128xf32, #tpu.memory_space<vmem>>, vector<2944x128xf32>
    %cst = arith.constant dense<0.000000e+00> : vector<8x128xf32>
    %2 = tpu.matmul %0, %1, %cst {dimension_numbers = #tpu.dot_dimension_numbers<[1], [0], [0], [1], [0, 0, 1, 1], [], []>} : vector<8x2944xf32>, vector<2944x128xf32>, vector<8x128xf32> -> vector<8x128xf32>
    %c0_3 = arith.constant 0 : index
    %c0_4 = arith.constant 0 : index
    %3 = vector.load %arg3[%c0_3, %c0_4] : memref<1x128xf32, #tpu.memory_space<vmem>>, vector<1x128xf32>
    %4 = vector.broadcast %3 : vector<1x128xf32> to vector<8x128xf32>
    %5 = arith.addf %2, %4 : vector<8x128xf32>
    %cst_5 = arith.constant 0.000000e+00 : f32
    %6 = vector.broadcast %cst_5 : f32 to vector<8x128xf32>
    %7 = arith.maximumf %5, %6 : vector<8x128xf32>
    %c0_6 = arith.constant 0 : index
    %c0_7 = arith.constant 0 : index
    %8 = vector.load %arg4[%c0_6, %c0_7] : memref<128x128xf32, #tpu.memory_space<vmem>>, vector<128x128xf32>
    %cst_8 = arith.constant dense<0.000000e+00> : vector<8x128xf32>
    %9 = tpu.matmul %7, %8, %cst_8 {dimension_numbers = #tpu.dot_dimension_numbers<[1], [0], [0], [1], [0, 0, 1, 1], [], []>} : vector<8x128xf32>, vector<128x128xf32>, vector<8x128xf32> -> vector<8x128xf32>
    %c0_9 = arith.constant 0 : index
    %c0_10 = arith.constant 0 : index
    %10 = vector.load %arg5[%c0_9, %c0_10] : memref<1x128xf32, #tpu.memory_space<vmem>>, vector<1x128xf32>
    %11 = vector.broadcast %10 : vector<1x128xf32> to vector<8x128xf32>
    %12 = arith.addf %9, %11 : vector<8x128xf32>
    %c0_11 = arith.constant 0 : index
    %c0_12 = arith.constant 0 : index
    %13 = vector.load %arg6[%c0_11, %c0_12] : memref<8x128xf32, #tpu.memory_space<vmem>>, vector<8x128xf32>
    tpu.vector_store %arg6[%c0_11, %c0_12], %12 {strides = array<i32>} : memref<8x128xf32, #tpu.memory_space<vmem>>, vector<8x128xf32>,
    return
  }
  func.func @transform_0(%arg0: i32) -> (i32, i32) {
    %c0_i32 = arith.constant 0 : i32
    %c0_i32_0 = arith.constant 0 : i32
    return %arg0, %c0_i32 : i32, i32
  }
  func.func @transform_1(%arg0: i32) -> (i32, i32) {
    %c0_i32 = arith.constant 0 : i32
    %c0_i32_0 = arith.constant 0 : i32
    %c0_i32_1 = arith.constant 0 : i32
    return %c0_i32, %c0_i32_0 : i32, i32
  }
  func.func @transform_2(%arg0: i32) -> (i32, i32) {
    %c0_i32 = arith.constant 0 : i32
    %c0_i32_0 = arith.constant 0 : i32
    %c0_i32_1 = arith.constant 0 : i32
    return %c0_i32, %c0_i32_0 : i32, i32
  }
  func.func @transform_3(%arg0: i32) -> (i32, i32) {
    %c0_i32 = arith.constant 0 : i32
    %c0_i32_0 = arith.constant 0 : i32
    %c0_i32_1 = arith.constant 0 : i32
    return %c0_i32, %c0_i32_0 : i32, i32
  }
  func.func @transform_4(%arg0: i32) -> (i32, i32) {
    %c0_i32 = arith.constant 0 : i32
    %c0_i32_0 = arith.constant 0 : i32
    %c0_i32_1 = arith.constant 0 : i32
    return %c0_i32, %c0_i32_0 : i32, i32
  }
  func.func @transform_5(%arg0: i32) -> (i32, i32) {
    %c0_i32 = arith.constant 0 : i32
    %c0_i32_0 = arith.constant 0 : i32
    return %arg0, %c0_i32 : i32, i32
  }
}

</mosaic_0001>

<llo_original>
// kernel: tpu_custom_call.1
$region0: #{tpu_custom_call.1}
  #allocation0 [shape = 'u32[]', space=smem, size = 0x4, offset = 0x4, fixed_abs, tag = 'smem constant byte address 0x4 - core index']
  #allocation1 [shape = 'u32[144,128]{1,0:T(1,128)}', space=vmem, size = 0x12000, scoped, tag = 'internal scratch']
  %s0 = inlined_call_operand.hbm [shape: f32[8,2944], index: 0, kind: input, shape index: {}]
  %s1 = inlined_call_operand.hbm [shape: f32[2944,128], index: 1, kind: input, shape index: {}]
  %s2 = inlined_call_operand.hbm [shape: f32[1,128], index: 2, kind: input, shape index: {}]
  %s3 = inlined_call_operand.hbm [shape: f32[128,128], index: 3, kind: input, shape index: {}]
  %s4 = inlined_call_operand.hbm [shape: f32[1,128], index: 4, kind: input, shape index: {}]
  %s5 = inlined_call_operand.hbm [shape: f32[8,128], index: 5, kind: output, shape index: {}]
  %s6 = sld [smem:[#allocation0]]
  $region50: #{tpu_custom_call.1} parent=0
    _
  %s8 = ssub.s32 1, %s6
  %s9 = scalar_select 0, %s8, %s6
  $region1: #{tpu_custom_call.1} parent=0
    #allocation2 [shape = 'u8[94208]{0}', space=vmem, size = 0x17000, scoped, tag = 'input window, operand 0, single buffered']
    #allocation3 [shape = 's32[1]{0}', space=sflag, size = 0x4, scoped, tag = 'scoped memory for tpu_custom_call.1']
    #allocation4 [shape = 's32[1]{0}', space=sflag, size = 0x4, scoped, tag = 'scoped memory for tpu_custom_call.1']
    #allocation5 [shape = 'u8[1507328]{0}', space=vmem, size = 0x170000, scoped, tag = 'input window, operand 1, single buffered']
    #allocation6 [shape = 's32[1]{0}', space=sflag, size = 0x4, scoped, tag = 'scoped memory for tpu_custom_call.1']
    #allocation7 [shape = 'u8[512]{0}', space=vmem, size = 0x400, scoped, tag = 'input window, operand 2, single buffered']
    #allocation8 [shape = 'u8[65536]{0}', space=vmem, size = 0x10000, scoped, tag = 'input window, operand 3, single buffered']
    #allocation9 [shape = 's32[1]{0}', space=sflag, size = 0x4, scoped, tag = 'scoped memory for tpu_custom_call.1']
    #allocation10 [shape = 'u8[512]{0}', space=vmem, size = 0x400, scoped, tag = 'input window, operand 4, single buffered']
    #allocation11 [shape = 'u8[4096]{0}', space=vmem, size = 0x1000, scoped, tag = 'output window, operand 0, single buffered']
    %10 = vsyncpa [#allocation3], 0
    %11 = vsyncpa [#allocation6], 0
    %12 = vsyncpa [#allocation9], 0
    %13 = vsyncpa [#allocation4], 0
    // Predicated region
    $region2: #{tpu_custom_call.1} parent=1 // pred_check
      _
    $region3: #{tpu_custom_call.1} parent=1 // pred_check_branch
      %15 = sbr.rel (0) target = $region5
    $region4: #{tpu_custom_call.1} parent=1 // pred_region
      %s17 = ssub.s32 2944, 2944
      %18 = vsyncadd [#allocation3], %s17
      %s20 = sshll.u32 [#allocation2], 4
      %s21 = int_to_ptr.vmem [resolvable:$true] %s20
      %23 = dma.hbm_to_vmem [thread:$0]  %s0, 2944, %s21, [#allocation3]
    $region5: #{tpu_custom_call.1} parent=1 // pred_fallthru
      _
    // Predicated region
    $region6: #{tpu_custom_call.1} parent=1 // pred_check
      _
    $region7: #{tpu_custom_call.1} parent=1 // pred_check_branch
      %25 = sbr.rel (0) target = $region9
    $region8: #{tpu_custom_call.1} parent=1 // pred_region
      %s27 = ssub.s32 47104, 47104
      %28 = vsyncadd [#allocation6], %s27
      %s29 = sshll.u32 [#allocation5], 4
      %s30 = int_to_ptr.vmem [resolvable:$true] %s29
      %35 = dma.hbm_to_vmem [thread:$0]  %s1, 47104, %s30, [#allocation6], 128, 128, 8
    $region9: #{tpu_custom_call.1} parent=1 // pred_fallthru
      _
    // Predicated region
    $region10: #{tpu_custom_call.1} parent=1 // pred_check
      _
    $region11: #{tpu_custom_call.1} parent=1 // pred_check_branch
      %37 = sbr.rel (0) target = $region13
    $region12: #{tpu_custom_call.1} parent=1 // pred_region
      %s39 = ssub.s32 16, 16
      %40 = vsyncadd [#allocation6], %s39
      %s42 = sshll.u32 [#allocation7], 4
      %s43 = int_to_ptr.vmem [resolvable:$true] %s42
      %45 = dma.hbm_to_vmem [thread:$0]  %s2, 16, %s43, [#allocation6]
    $region13: #{tpu_custom_call.1} parent=1 // pred_fallthru
      _
    // Predicated region
    $region14: #{tpu_custom_call.1} parent=1 // pred_check
      _
    $region15: #{tpu_custom_call.1} parent=1 // pred_check_branch
      %47 = sbr.rel (0) target = $region17
    $region16: #{tpu_custom_call.1} parent=1 // pred_region
      %s49 = ssub.s32 2048, 2048
      %50 = vsyncadd [#allocation9], %s49
      %s51 = sshll.u32 [#allocation8], 4
      %s52 = int_to_ptr.vmem [resolvable:$true] %s51
      %57 = dma.hbm_to_vmem [thread:$0]  %s3, 2048, %s52, [#allocation9], 128, 128, 8
    $region17: #{tpu_custom_call.1} parent=1 // pred_fallthru
      _
    // Predicated region
    $region18: #{tpu_custom_call.1} parent=1 // pred_check
      _
    $region19: #{tpu_custom_call.1} parent=1 // pred_check_branch
      %59 = sbr.rel (0) target = $region21
    $region20: #{tpu_custom_call.1} parent=1 // pred_region
      %s61 = ssub.s32 16, 16
      %62 = vsyncadd [#allocation9], %s61
      %s64 = sshll.u32 [#allocation10], 4
      %s65 = int_to_ptr.vmem [resolvable:$true] %s64
      %67 = dma.hbm_to_vmem [thread:$0]  %s4, 16, %s65, [#allocation9]
    $region21: #{tpu_custom_call.1} parent=1 // pred_fallthru
      _
    // Predicated region
    $region22: #{tpu_custom_call.1} parent=1 // pred_check
      _
    $region23: #{tpu_custom_call.1} parent=1 // pred_check_branch
      %69 = sbr.rel (0) target = $region25
    $region24: #{tpu_custom_call.1} parent=1 // pred_region
      %70 = dma.done [#allocation3], 2944
    $region25: #{tpu_custom_call.1} parent=1 // pred_fallthru
      _
    // Predicated region
    $region26: #{tpu_custom_call.1} parent=1 // pred_check
      _
    $region27: #{tpu_custom_call.1} parent=1 // pred_check_branch
      %72 = sbr.rel (0) target = $region29
    $region28: #{tpu_custom_call.1} parent=1 // pred_region
      %73 = dma.done [#allocation6], 47104
    $region29: #{tpu_custom_call.1} parent=1 // pred_fallthru
      _
    // Predicated region
    $region30: #{tpu_custom_call.1} parent=1 // pred_check
      _
    $region31: #{tpu_custom_call.1} parent=1 // pred_check_branch
      %75 = sbr.rel (0) target = $region33
    $region32: #{tpu_custom_call.1} parent=1 // pred_region
      %76 = dma.done [#allocation6], 16
    $region33: #{tpu_custom_call.1} parent=1 // pred_fallthru
      _
    // Predicated region
    $region34: #{tpu_custom_call.1} parent=1 // pred_check
      _
    $region35: #{tpu_custom_call.1} parent=1 // pred_check_branch
      %78 = sbr.rel (0) target = $region37
    $region36: #{tpu_custom_call.1} parent=1 // pred_region
      %79 = dma.done [#allocation9], 2048
    $region37: #{tpu_custom_call.1} parent=1 // pred_fallthru
      _
    // Predicated region
    $region38: #{tpu_custom_call.1} parent=1 // pred_check
      _
    $region39: #{tpu_custom_call.1} parent=1 // pred_check_branch
      %81 = sbr.rel (0) target = $region41
    $region40: #{tpu_custom_call.1} parent=1 // pred_region
      %82 = dma.done [#allocation9], 16
    $region41: #{tpu_custom_call.1} parent=1 // pred_fallthru
      _
    %v83 = vld [vmem:[#allocation2] sm:$0xff]
    %v84 = vld [vmem:[#allocation2 + $0x8] sm:$0xff]
    %v85 = vld [vmem:[#allocation2 + $0x10] sm:$0xff]
    %v86 = vld [vmem:[#allocation2 + $0x18] sm:$0xff]
    %v87 = vld [vmem:[#allocation2 + $0x20] sm:$0xff]
    %v88 = vld [vmem:[#allocation2 + $0x28] sm:$0xff]
    %v89 = vld [vmem:[#allocation2 + $0x30] sm:$0xff]
    %v90 = vld [vmem:[#allocation2 + $0x38] sm:$0xff]
    %v91 = vld [vmem:[#allocation2 + $0x40] sm:$0xff]
    %v92 = vld [vmem:[#allocation2 + $0x48] sm:$0xff]
    %v93 = vld [vmem:[#allocation2 + $0x50] sm:$0xff]
    %v94 = vld [vmem:[#allocation2 + $0x58] sm:$0xff]
    %v95 = vld [vmem:[#allocation2 + $0x60] sm:$0xff]
    %v96 = vld [vmem:[#allocation2 + $0x68] sm:$0xff]
    %v97 = vld [vmem:[#allocation2 + $0x70] sm:$0xff]
    %v98 = vld [vmem:[#allocation2 + $0x78] sm:$0xff]
    %v99 = vld [vmem:[#allocation2 + $0x80] sm:$0xff]
    %v100 = vld [vmem:[#allocation2 + $0x88] sm:$0xff]
    %v101 = vld [vmem:[#allocation2 + $0x90] sm:$0xff]
    %v102 = vld [vmem:[#allocation2 + $0x98] sm:$0xff]
    %v103 = vld [vmem:[#allocation2 + $0xa0] sm:$0xff]
    %v104 = vld [vmem:[#allocation2 + $0xa8] sm:$0xff]
    %v105 = vld [vmem:[#allocation2 + $0xb0] sm:$0xff]
    %v106 = vld [vmem:[#allocation5] sm:$0xff]
    %v107 = vld [vmem:[#allocation5 + $0x8] sm:$0xff]
    %v108 = vld [vmem:[#allocation5 + $0x10] sm:$0xff]
    %v109 = vld [vmem:[#allocation5 + $0x18] sm:$0xff]
    %v110 = vld [vmem:[#allocation5 + $0x20] sm:$0xff]
    %v111 = vld [vmem:[#allocation5 + $0x28] sm:$0xff]
    %v112 = vld [vmem:[#allocation5 + $0x30] sm:$0xff]
    %v113 = vld [vmem:[#allocation5 + $0x38] sm:$0xff]
    %v114 = vld [vmem:[#allocation5 + $0x40] sm:$0xff]
    %v115 = vld [vmem:[#allocation5 + $0x48] sm:$0xff]
    %v116 = vld [vmem:[#allocation5 + $0x50] sm:$0xff]
    %v117 = vld [vmem:[#allocation5 + $0x58] sm:$0xff]
    %v118 = vld [vmem:[#allocation5 + $0x60] sm:$0xff]
    %v119 = vld [vmem:[#allocation5 + $0x68] sm:$0xff]
    %v120 = vld [vmem:[#allocation5 + $0x70] sm:$0xff]
    %v121 = vld [vmem:[#allocation5 + $0x78] sm:$0xff]
    %v122 = vld [vmem:[#allocation5 + $0x80] sm:$0xff]
    %v123 = vld [vmem:[#allocation5 + $0x88] sm:$0xff]
    %v124 = vld [vmem:[#allocation5 + $0x90] sm:$0xff]
    %v125 = vld [vmem:[#allocation5 + $0x98] sm:$0xff]
    %v126 = vld [vmem:[#allocation5 + $0xa0] sm:$0xff]
    %v127 = vld [vmem:[#allocation5 + $0xa8] sm:$0xff]
    %v128 = vld [vmem:[#allocation5 + $0xb0] sm:$0xff]
    %v129 = vld [vmem:[#allocation5 + $0xb8] sm:$0xff]
    %v130 = vld [vmem:[#allocation5 + $0xc0] sm:$0xff]
    %v131 = vld [vmem:[#allocation5 + $0xc8] sm:$0xff]
    %v132 = vld [vmem:[#allocation5 + $0xd0] sm:$0xff]
    %v133 = vld [vmem:[#allocation5 + $0xd8] sm:$0xff]
    %v134 = vld [vmem:[#allocation5 + $0xe0] sm:$0xff]
    %v135 = vld [vmem:[#allocation5 + $0xe8] sm:$0xff]
    %v136 = vld [vmem:[#allocation5 + $0xf0] sm:$0xff]
    %v137 = vld [vmem:[#allocation5 + $0xf8] sm:$0xff]
    %v138 = vld [vmem:[#allocation5 + $0x100] sm:$0xff]
    %v139 = vld [vmem:[#allocation5 + $0x108] sm:$0xff]
    %v140 = vld [vmem:[#allocation5 + $0x110] sm:$0xff]
    %v141 = vld [vmem:[#allocation5 + $0x118] sm:$0xff]
    %v142 = vld [vmem:[#allocation5 + $0x120] sm:$0xff]
    %v143 = vld [vmem:[#allocation5 + $0x128] sm:$0xff]
    %v144 = vld [vmem:[#allocation5 + $0x130] sm:$0xff]
    %v145 = vld [vmem:[#allocation5 + $0x138] sm:$0xff]
    %v146 = vld [vmem:[#allocation5 + $0x140] sm:$0xff]
    %v147 = vld [vmem:[#allocation5 + $0x148] sm:$0xff]
    %v148 = vld [vmem:[#allocation5 + $0x150] sm:$0xff]
    %v149 = vld [vmem:[#allocation5 + $0x158] sm:$0xff]
    %v150 = vld [vmem:[#allocation5 + $0x160] sm:$0xff]
    %v151 = vld [vmem:[#allocation5 + $0x168] sm:$0xff]
    %v152 = vld [vmem:[#allocation5 + $0x170] sm:$0xff]
    %v153 = vld [vmem:[#allocation5 + $0x178] sm:$0xff]
    %v154 = vld [vmem:[#allocation5 + $0x180] sm:$0xff]
    %v155 = vld [vmem:[#allocation5 + $0x188] sm:$0xff]
    %v156 = vld [vmem:[#allocation5 + $0x190] sm:$0xff]
    %v157 = vld [vmem:[#allocation5 + $0x198] sm:$0xff]
    %v158 = vld [vmem:[#allocation5 + $0x1a0] sm:$0xff]
    %v159 = vld [vmem:[#allocation5 + $0x1a8] sm:$0xff]
    %v160 = vld [vmem:[#allocation5 + $0x1b0] sm:$0xff]
    %v161 = vld [vmem:[#allocation5 + $0x1b8] sm:$0xff]
    %v162 = vld [vmem:[#allocation5 + $0x1c0] sm:$0xff]
    %v163 = vld [vmem:[#allocation5 + $0x1c8] sm:$0xff]
    %v164 = vld [vmem:[#allocation5 + $0x1d0] sm:$0xff]
    %v165 = vld [vmem:[#allocation5 + $0x1d8] sm:$0xff]
    %v166 = vld [vmem:[#allocation5 + $0x1e0] sm:$0xff]
    %v167 = vld [vmem:[#allocation5 + $0x1e8] sm:$0xff]
    %v168 = vld [vmem:[#allocation5 + $0x1f0] sm:$0xff]
    %v169 = vld [vmem:[#allocation5 + $0x1f8] sm:$0xff]
    %v170 = vld [vmem:[#allocation5 + $0x200] sm:$0xff]
    %v171 = vld [vmem:[#allocation5 + $0x208] sm:$0xff]
    %v172 = vld [vmem:[#allocation5 + $0x210] sm:$0xff]
    %v173 = vld [vmem:[#allocation5 + $0x218] sm:$0xff]
    %v174 = vld [vmem:[#allocation5 + $0x220] sm:$0xff]
    %v175 = vld [vmem:[#allocation5 + $0x228] sm:$0xff]
    %v176 = vld [vmem:[#allocation5 + $0x230] sm:$0xff]
    %v177 = vld [vmem:[#allocation5 + $0x238] sm:$0xff]
    %v178 = vld [vmem:[#allocation5 + $0x240] sm:$0xff]
    %v179 = vld [vmem:[#allocation5 + $0x248] sm:$0xff]
    %v180 = vld [vmem:[#allocation5 + $0x250] sm:$0xff]
    %v181 = vld [vmem:[#allocation5 + $0x258] sm:$0xff]
    %v182 = vld [vmem:[#allocation5 + $0x260] sm:$0xff]
    %v183 = vld [vmem:[#allocation5 + $0x268] sm:$0xff]
    %v184 = vld [vmem:[#allocation5 + $0x270] sm:$0xff]
    %v185 = vld [vmem:[#allocation5 + $0x278] sm:$0xff]
    %v186 = vld [vmem:[#allocation5 + $0x280] sm:$0xff]
    %v187 = vld [vmem:[#allocation5 + $0x288] sm:$0xff]
    %v188 = vld [vmem:[#allocation5 + $0x290] sm:$0xff]
    %v189 = vld [vmem:[#allocation5 + $0x298] sm:$0xff]
    %v190 = vld [vmem:[#allocation5 + $0x2a0] sm:$0xff]
    %v191 = vld [vmem:[#allocation5 + $0x2a8] sm:$0xff]
    %v192 = vld [vmem:[#allocation5 + $0x2b0] sm:$0xff]
    %v193 = vld [vmem:[#allocation5 + $0x2b8] sm:$0xff]
    %v194 = vld [vmem:[#allocation5 + $0x2c0] sm:$0xff]
    %v195 = vld [vmem:[#allocation5 + $0x2c8] sm:$0xff]
    %v196 = vld [vmem:[#allocation5 + $0x2d0] sm:$0xff]
    %v197 = vld [vmem:[#allocation5 + $0x2d8] sm:$0xff]
    %v198 = vld [vmem:[#allocation5 + $0x2e0] sm:$0xff]
    %v199 = vld [vmem:[#allocation5 + $0x2e8] sm:$0xff]
    %v200 = vld [vmem:[#allocation5 + $0x2f0] sm:$0xff]
    %v201 = vld [vmem:[#allocation5 + $0x2f8] sm:$0xff]
    %v202 = vld [vmem:[#allocation5 + $0x300] sm:$0xff]
    %v203 = vld [vmem:[#allocation5 + $0x308] sm:$0xff]
    %v204 = vld [vmem:[#allocation5 + $0x310] sm:$0xff]
    %v205 = vld [vmem:[#allocation5 + $0x318] sm:$0xff]
    %v206 = vld [vmem:[#allocation5 + $0x320] sm:$0xff]
    %v207 = vld [vmem:[#allocation5 + $0x328] sm:$0xff]
    %v208 = vld [vmem:[#allocation5 + $0x330] sm:$0xff]
    %v209 = vld [vmem:[#allocation5 + $0x338] sm:$0xff]
    %v210 = vld [vmem:[#allocation5 + $0x340] sm:$0xff]
    %v211 = vld [vmem:[#allocation5 + $0x348] sm:$0xff]
    %v212 = vld [vmem:[#allocation5 + $0x350] sm:$0xff]
    %v213 = vld [vmem:[#allocation5 + $0x358] sm:$0xff]
    %v214 = vld [vmem:[#allocation5 + $0x360] sm:$0xff]
    %v215 = vld [vmem:[#allocation5 + $0x368] sm:$0xff]
    %v216 = vld [vmem:[#allocation5 + $0x370] sm:$0xff]
    %v217 = vld [vmem:[#allocation5 + $0x378] sm:$0xff]
    %v218 = vld [vmem:[#allocation5 + $0x380] sm:$0xff]
    %v219 = vld [vmem:[#allocation5 + $0x388] sm:$0xff]
    %v220 = vld [vmem:[#allocation5 + $0x390] sm:$0xff]
    %v221 = vld [vmem:[#allocation5 + $0x398] sm:$0xff]
    %v222 = vld [vmem:[#allocation5 + $0x3a0] sm:$0xff]
    %v223 = vld [vmem:[#allocation5 + $0x3a8] sm:$0xff]
    %v224 = vld [vmem:[#allocation5 + $0x3b0] sm:$0xff]
    %v225 = vld [vmem:[#allocation5 + $0x3b8] sm:$0xff]
    %v226 = vld [vmem:[#allocation5 + $0x3c0] sm:$0xff]
    %v227 = vld [vmem:[#allocation5 + $0x3c8] sm:$0xff]
    %v228 = vld [vmem:[#allocation5 + $0x3d0] sm:$0xff]
    %v229 = vld [vmem:[#allocation5 + $0x3d8] sm:$0xff]
    %v230 = vld [vmem:[#allocation5 + $0x3e0] sm:$0xff]
    %v231 = vld [vmem:[#allocation5 + $0x3e8] sm:$0xff]
    %v232 = vld [vmem:[#allocation5 + $0x3f0] sm:$0xff]
    %v233 = vld [vmem:[#allocation5 + $0x3f8] sm:$0xff]
    %v234 = vld [vmem:[#allocation5 + $0x400] sm:$0xff]
    %v235 = vld [vmem:[#allocation5 + $0x408] sm:$0xff]
    %v236 = vld [vmem:[#allocation5 + $0x410] sm:$0xff]
    %v237 = vld [vmem:[#allocation5 + $0x418] sm:$0xff]
    %v238 = vld [vmem:[#allocation5 + $0x420] sm:$0xff]
    %v239 = vld [vmem:[#allocation5 + $0x428] sm:$0xff]
    %v240 = vld [vmem:[#allocation5 + $0x430] sm:$0xff]
    %v241 = vld [vmem:[#allocation5 + $0x438] sm:$0xff]
    %v242 = vld [vmem:[#allocation5 + $0x440] sm:$0xff]
    %v243 = vld [vmem:[#allocation5 + $0x448] sm:$0xff]
    %v244 = vld [vmem:[#allocation5 + $0x450] sm:$0xff]
    %v245 = vld [vmem:[#allocation5 + $0x458] sm:$0xff]
    %v246 = vld [vmem:[#allocation5 + $0x460] sm:$0xff]
    %v247 = vld [vmem:[#allocation5 + $0x468] sm:$0xff]
    %v248 = vld [vmem:[#allocation5 + $0x470] sm:$0xff]
    %v249 = vld [vmem:[#allocation5 + $0x478] sm:$0xff]
    %v250 = vld [vmem:[#allocation5 + $0x480] sm:$0xff]
    %v251 = vld [vmem:[#allocation5 + $0x488] sm:$0xff]
    %v252 = vld [vmem:[#allocation5 + $0x490] sm:$0xff]
    %v253 = vld [vmem:[#allocation5 + $0x498] sm:$0xff]
    %v254 = vld [vmem:[#allocation5 + $0x4a0] sm:$0xff]
    %v255 = vld [vmem:[#allocation5 + $0x4a8] sm:$0xff]
    %v256 = vld [vmem:[#allocation5 + $0x4b0] sm:$0xff]
    %v257 = vld [vmem:[#allocation5 + $0x4b8] sm:$0xff]
    %v258 = vld [vmem:[#allocation5 + $0x4c0] sm:$0xff]
    %v259 = vld [vmem:[#allocation5 + $0x4c8] sm:$0xff]
    %v260 = vld [vmem:[#allocation5 + $0x4d0] sm:$0xff]
    %v261 = vld [vmem:[#allocation5 + $0x4d8] sm:$0xff]
    %v262 = vld [vmem:[#allocation5 + $0x4e0] sm:$0xff]
    %v263 = vld [vmem:[#allocation5 + $0x4e8] sm:$0xff]
    %v264 = vld [vmem:[#allocation5 + $0x4f0] sm:$0xff]
    %v265 = vld [vmem:[#allocation5 + $0x4f8] sm:$0xff]
    %v266 = vld [vmem:[#allocation5 + $0x500] sm:$0xff]
    %v267 = vld [vmem:[#allocation5 + $0x508] sm:$0xff]
    %v268 = vld [vmem:[#allocation5 + $0x510] sm:$0xff]
    %v269 = vld [vmem:[#allocation5 + $0x518] sm:$0xff]
    %v270 = vld [vmem:[#allocation5 + $0x520] sm:$0xff]
    %v271 = vld [vmem:[#allocation5 + $0x528] sm:$0xff]
    %v272 = vld [vmem:[#allocation5 + $0x530] sm:$0xff]
    %v273 = vld [vmem:[#allocation5 + $0x538] sm:$0xff]
    %v274 = vld [vmem:[#allocation5 + $0x540] sm:$0xff]
    %v275 = vld [vmem:[#allocation5 + $0x548] sm:$0xff]
    %v276 = vld [vmem:[#allocation5 + $0x550] sm:$0xff]
    %v277 = vld [vmem:[#allocation5 + $0x558] sm:$0xff]
    %v278 = vld [vmem:[#allocation5 + $0x560] sm:$0xff]
    %v279 = vld [vmem:[#allocation5 + $0x568] sm:$0xff]
    %v280 = vld [vmem:[#allocation5 + $0x570] sm:$0xff]
    %v281 = vld [vmem:[#allocation5 + $0x578] sm:$0xff]
    %v282 = vld [vmem:[#allocation5 + $0x580] sm:$0xff]
    %v283 = vld [vmem:[#allocation5 + $0x588] sm:$0xff]
    %v284 = vld [vmem:[#allocation5 + $0x590] sm:$0xff]
    %v285 = vld [vmem:[#allocation5 + $0x598] sm:$0xff]
    %v286 = vld [vmem:[#allocation5 + $0x5a0] sm:$0xff]
    %v287 = vld [vmem:[#allocation5 + $0x5a8] sm:$0xff]
    %v288 = vld [vmem:[#allocation5 + $0x5b0] sm:$0xff]
    %v289 = vld [vmem:[#allocation5 + $0x5b8] sm:$0xff]
    %v290 = vld [vmem:[#allocation5 + $0x5c0] sm:$0xff]
    %v291 = vld [vmem:[#allocation5 + $0x5c8] sm:$0xff]
    %v292 = vld [vmem:[#allocation5 + $0x5d0] sm:$0xff]
    %v293 = vld [vmem:[#allocation5 + $0x5d8] sm:$0xff]
    %v294 = vld [vmem:[#allocation5 + $0x5e0] sm:$0xff]
    %v295 = vld [vmem:[#allocation5 + $0x5e8] sm:$0xff]
    %v296 = vld [vmem:[#allocation5 + $0x5f0] sm:$0xff]
    %v297 = vld [vmem:[#allocation5 + $0x5f8] sm:$0xff]
    %v298 = vld [vmem:[#allocation5 + $0x600] sm:$0xff]
    %v299 = vld [vmem:[#allocation5 + $0x608] sm:$0xff]
    %v300 = vld [vmem:[#allocation5 + $0x610] sm:$0xff]
    %v301 = vld [vmem:[#allocation5 + $0x618] sm:$0xff]
    %v302 = vld [vmem:[#allocation5 + $0x620] sm:$0xff]
    %v303 = vld [vmem:[#allocation5 + $0x628] sm:$0xff]
    %v304 = vld [vmem:[#allocation5 + $0x630] sm:$0xff]
    %v305 = vld [vmem:[#allocation5 + $0x638] sm:$0xff]
    %v306 = vld [vmem:[#allocation5 + $0x640] sm:$0xff]
    %v307 = vld [vmem:[#allocation5 + $0x648] sm:$0xff]
    %v308 = vld [vmem:[#allocation5 + $0x650] sm:$0xff]
    %v309 = vld [vmem:[#allocation5 + $0x658] sm:$0xff]
    %v310 = vld [vmem:[#allocation5 + $0x660] sm:$0xff]
    %v311 = vld [vmem:[#allocation5 + $0x668] sm:$0xff]
    %v312 = vld [vmem:[#allocation5 + $0x670] sm:$0xff]
    %v313 = vld [vmem:[#allocation5 + $0x678] sm:$0xff]
    %v314 = vld [vmem:[#allocation5 + $0x680] sm:$0xff]
    %v315 = vld [vmem:[#allocation5 + $0x688] sm:$0xff]
    %v316 = vld [vmem:[#allocation5 + $0x690] sm:$0xff]
    %v317 = vld [vmem:[#allocation5 + $0x698] sm:$0xff]
    %v318 = vld [vmem:[#allocation5 + $0x6a0] sm:$0xff]
    %v319 = vld [vmem:[#allocation5 + $0x6a8] sm:$0xff]
    %v320 = vld [vmem:[#allocation5 + $0x6b0] sm:$0xff]
    %v321 = vld [vmem:[#allocation5 + $0x6b8] sm:$0xff]
    %v322 = vld [vmem:[#allocation5 + $0x6c0] sm:$0xff]
    %v323 = vld [vmem:[#allocation5 + $0x6c8] sm:$0xff]
    %v324 = vld [vmem:[#allocation5 + $0x6d0] sm:$0xff]
    %v325 = vld [vmem:[#allocation5 + $0x6d8] sm:$0xff]
    %v326 = vld [vmem:[#allocation5 + $0x6e0] sm:$0xff]
    %v327 = vld [vmem:[#allocation5 + $0x6e8] sm:$0xff]
    %v328 = vld [vmem:[#allocation5 + $0x6f0] sm:$0xff]
    %v329 = vld [vmem:[#allocation5 + $0x6f8] sm:$0xff]
    %v330 = vld [vmem:[#allocation5 + $0x700] sm:$0xff]
    %v331 = vld [vmem:[#allocation5 + $0x708] sm:$0xff]
    %v332 = vld [vmem:[#allocation5 + $0x710] sm:$0xff]
    %v333 = vld [vmem:[#allocation5 + $0x718] sm:$0xff]
    %v334 = vld [vmem:[#allocation5 + $0x720] sm:$0xff]
    %v335 = vld [vmem:[#allocation5 + $0x728] sm:$0xff]
    %v336 = vld [vmem:[#allocation5 + $0x730] sm:$0xff]
    %v337 = vld [vmem:[#allocation5 + $0x738] sm:$0xff]
    %v338 = vld [vmem:[#allocation5 + $0x740] sm:$0xff]
    %v339 = vld [vmem:[#allocation5 + $0x748] sm:$0xff]
    %v340 = vld [vmem:[#allocation5 + $0x750] sm:$0xff]
    %v341 = vld [vmem:[#allocation5 + $0x758] sm:$0xff]
    %v342 = vld [vmem:[#allocation5 + $0x760] sm:$0xff]
    %v343 = vld [vmem:[#allocation5 + $0x768] sm:$0xff]
    %v344 = vld [vmem:[#allocation5 + $0x770] sm:$0xff]
    %v345 = vld [vmem:[#allocation5 + $0x778] sm:$0xff]
    %v346 = vld [vmem:[#allocation5 + $0x780] sm:$0xff]
    %v347 = vld [vmem:[#allocation5 + $0x788] sm:$0xff]
    %v348 = vld [vmem:[#allocation5 + $0x790] sm:$0xff]
    %v349 = vld [vmem:[#allocation5 + $0x798] sm:$0xff]
    %v350 = vld [vmem:[#allocation5 + $0x7a0] sm:$0xff]
    %v351 = vld [vmem:[#allocation5 + $0x7a8] sm:$0xff]
    %v352 = vld [vmem:[#allocation5 + $0x7b0] sm:$0xff]
    %v353 = vld [vmem:[#allocation5 + $0x7b8] sm:$0xff]
    %v354 = vld [vmem:[#allocation5 + $0x7c0] sm:$0xff]
    %v355 = vld [vmem:[#allocation5 + $0x7c8] sm:$0xff]
    %v356 = vld [vmem:[#allocation5 + $0x7d0] sm:$0xff]
    %v357 = vld [vmem:[#allocation5 + $0x7d8] sm:$0xff]
    %v358 = vld [vmem:[#allocation5 + $0x7e0] sm:$0xff]
    %v359 = vld [vmem:[#allocation5 + $0x7e8] sm:$0xff]
    %v360 = vld [vmem:[#allocation5 + $0x7f0] sm:$0xff]
    %v361 = vld [vmem:[#allocation5 + $0x7f8] sm:$0xff]
    %v362 = vld [vmem:[#allocation5 + $0x800] sm:$0xff]
    %v363 = vld [vmem:[#allocation5 + $0x808] sm:$0xff]
    %v364 = vld [vmem:[#allocation5 + $0x810] sm:$0xff]
    %v365 = vld [vmem:[#allocation5 + $0x818] sm:$0xff]
    %v366 = vld [vmem:[#allocation5 + $0x820] sm:$0xff]
    %v367 = vld [vmem:[#allocation5 + $0x828] sm:$0xff]
    %v368 = vld [vmem:[#allocation5 + $0x830] sm:$0xff]
    %v369 = vld [vmem:[#allocation5 + $0x838] sm:$0xff]
    %v370 = vld [vmem:[#allocation5 + $0x840] sm:$0xff]
    %v371 = vld [vmem:[#allocation5 + $0x848] sm:$0xff]
    %v372 = vld [vmem:[#allocation5 + $0x850] sm:$0xff]
    %v373 = vld [vmem:[#allocation5 + $0x858] sm:$0xff]
    %v374 = vld [vmem:[#allocation5 + $0x860] sm:$0xff]
    %v375 = vld [vmem:[#allocation5 + $0x868] sm:$0xff]
    %v376 = vld [vmem:[#allocation5 + $0x870] sm:$0xff]
    %v377 = vld [vmem:[#allocation5 + $0x878] sm:$0xff]
    %v378 = vld [vmem:[#allocation5 + $0x880] sm:$0xff]
    %v379 = vld [vmem:[#allocation5 + $0x888] sm:$0xff]
    %v380 = vld [vmem:[#allocation5 + $0x890] sm:$0xff]
    %v381 = vld [vmem:[#allocation5 + $0x898] sm:$0xff]
    %v382 = vld [vmem:[#allocation5 + $0x8a0] sm:$0xff]
    %v383 = vld [vmem:[#allocation5 + $0x8a8] sm:$0xff]
    %v384 = vld [vmem:[#allocation5 + $0x8b0] sm:$0xff]
    %v385 = vld [vmem:[#allocation5 + $0x8b8] sm:$0xff]
    %v386 = vld [vmem:[#allocation5 + $0x8c0] sm:$0xff]
    %v387 = vld [vmem:[#allocation5 + $0x8c8] sm:$0xff]
    %v388 = vld [vmem:[#allocation5 + $0x8d0] sm:$0xff]
    %v389 = vld [vmem:[#allocation5 + $0x8d8] sm:$0xff]
    %v390 = vld [vmem:[#allocation5 + $0x8e0] sm:$0xff]
    %v391 = vld [vmem:[#allocation5 + $0x8e8] sm:$0xff]
    %v392 = vld [vmem:[#allocation5 + $0x8f0] sm:$0xff]
    %v393 = vld [vmem:[#allocation5 + $0x8f8] sm:$0xff]
    %v394 = vld [vmem:[#allocation5 + $0x900] sm:$0xff]
    %v395 = vld [vmem:[#allocation5 + $0x908] sm:$0xff]
    %v396 = vld [vmem:[#allocation5 + $0x910] sm:$0xff]
    %v397 = vld [vmem:[#allocation5 + $0x918] sm:$0xff]
    %v398 = vld [vmem:[#allocation5 + $0x920] sm:$0xff]
    %v399 = vld [vmem:[#allocation5 + $0x928] sm:$0xff]
    %v400 = vld [vmem:[#allocation5 + $0x930] sm:$0xff]
    %v401 = vld [vmem:[#allocation5 + $0x938] sm:$0xff]
    %v402 = vld [vmem:[#allocation5 + $0x940] sm:$0xff]
    %v403 = vld [vmem:[#allocation5 + $0x948] sm:$0xff]
    %v404 = vld [vmem:[#allocation5 + $0x950] sm:$0xff]
    %v405 = vld [vmem:[#allocation5 + $0x958] sm:$0xff]
    %v406 = vld [vmem:[#allocation5 + $0x960] sm:$0xff]
    %v407 = vld [vmem:[#allocation5 + $0x968] sm:$0xff]
    %v408 = vld [vmem:[#allocation5 + $0x970] sm:$0xff]
    %v409 = vld [vmem:[#allocation5 + $0x978] sm:$0xff]
    %v410 = vld [vmem:[#allocation5 + $0x980] sm:$0xff]
    %v411 = vld [vmem:[#allocation5 + $0x988] sm:$0xff]
    %v412 = vld [vmem:[#allocation5 + $0x990] sm:$0xff]
    %v413 = vld [vmem:[#allocation5 + $0x998] sm:$0xff]
    %v414 = vld [vmem:[#allocation5 + $0x9a0] sm:$0xff]
    %v415 = vld [vmem:[#allocation5 + $0x9a8] sm:$0xff]
    %v416 = vld [vmem:[#allocation5 + $0x9b0] sm:$0xff]
    %v417 = vld [vmem:[#allocation5 + $0x9b8] sm:$0xff]
    %v418 = vld [vmem:[#allocation5 + $0x9c0] sm:$0xff]
    %v419 = vld [vmem:[#allocation5 + $0x9c8] sm:$0xff]
    %v420 = vld [vmem:[#allocation5 + $0x9d0] sm:$0xff]
    %v421 = vld [vmem:[#allocation5 + $0x9d8] sm:$0xff]
    %v422 = vld [vmem:[#allocation5 + $0x9e0] sm:$0xff]
    %v423 = vld [vmem:[#allocation5 + $0x9e8] sm:$0xff]
    %v424 = vld [vmem:[#allocation5 + $0x9f0] sm:$0xff]
    %v425 = vld [vmem:[#allocation5 + $0x9f8] sm:$0xff]
    %v426 = vld [vmem:[#allocation5 + $0xa00] sm:$0xff]
    %v427 = vld [vmem:[#allocation5 + $0xa08] sm:$0xff]
    %v428 = vld [vmem:[#allocation5 + $0xa10] sm:$0xff]
    %v429 = vld [vmem:[#allocation5 + $0xa18] sm:$0xff]
    %v430 = vld [vmem:[#allocation5 + $0xa20] sm:$0xff]
    %v431 = vld [vmem:[#allocation5 + $0xa28] sm:$0xff]
    %v432 = vld [vmem:[#allocation5 + $0xa30] sm:$0xff]
    %v433 = vld [vmem:[#allocation5 + $0xa38] sm:$0xff]
    %v434 = vld [vmem:[#allocation5 + $0xa40] sm:$0xff]
    %v435 = vld [vmem:[#allocation5 + $0xa48] sm:$0xff]
    %v436 = vld [vmem:[#allocation5 + $0xa50] sm:$0xff]
    %v437 = vld [vmem:[#allocation5 + $0xa58] sm:$0xff]
    %v438 = vld [vmem:[#allocation5 + $0xa60] sm:$0xff]
    %v439 = vld [vmem:[#allocation5 + $0xa68] sm:$0xff]
    %v440 = vld [vmem:[#allocation5 + $0xa70] sm:$0xff]
    %v441 = vld [vmem:[#allocation5 + $0xa78] sm:$0xff]
    %v442 = vld [vmem:[#allocation5 + $0xa80] sm:$0xff]
    %v443 = vld [vmem:[#allocation5 + $0xa88] sm:$0xff]
    %v444 = vld [vmem:[#allocation5 + $0xa90] sm:$0xff]
    %v445 = vld [vmem:[#allocation5 + $0xa98] sm:$0xff]
    %v446 = vld [vmem:[#allocation5 + $0xaa0] sm:$0xff]
    %v447 = vld [vmem:[#allocation5 + $0xaa8] sm:$0xff]
    %v448 = vld [vmem:[#allocation5 + $0xab0] sm:$0xff]
    %v449 = vld [vmem:[#allocation5 + $0xab8] sm:$0xff]
    %v450 = vld [vmem:[#allocation5 + $0xac0] sm:$0xff]
    %v451 = vld [vmem:[#allocation5 + $0xac8] sm:$0xff]
    %v452 = vld [vmem:[#allocation5 + $0xad0] sm:$0xff]
    %v453 = vld [vmem:[#allocation5 + $0xad8] sm:$0xff]
    %v454 = vld [vmem:[#allocation5 + $0xae0] sm:$0xff]
    %v455 = vld [vmem:[#allocation5 + $0xae8] sm:$0xff]
    %v456 = vld [vmem:[#allocation5 + $0xaf0] sm:$0xff]
    %v457 = vld [vmem:[#allocation5 + $0xaf8] sm:$0xff]
    %v458 = vld [vmem:[#allocation5 + $0xb00] sm:$0xff]
    %v459 = vld [vmem:[#allocation5 + $0xb08] sm:$0xff]
    %v460 = vld [vmem:[#allocation5 + $0xb10] sm:$0xff]
    %v461 = vld [vmem:[#allocation5 + $0xb18] sm:$0xff]
    %v462 = vld [vmem:[#allocation5 + $0xb20] sm:$0xff]
    %v463 = vld [vmem:[#allocation5 + $0xb28] sm:$0xff]
    %v464 = vld [vmem:[#allocation5 + $0xb30] sm:$0xff]
    %v465 = vld [vmem:[#allocation5 + $0xb38] sm:$0xff]
    %v466 = vld [vmem:[#allocation5 + $0xb40] sm:$0xff]
    %v467 = vld [vmem:[#allocation5 + $0xb48] sm:$0xff]
    %v468 = vld [vmem:[#allocation5 + $0xb50] sm:$0xff]
    %v469 = vld [vmem:[#allocation5 + $0xb58] sm:$0xff]
    %v470 = vld [vmem:[#allocation5 + $0xb60] sm:$0xff]
    %v471 = vld [vmem:[#allocation5 + $0xb68] sm:$0xff]
    %v472 = vld [vmem:[#allocation5 + $0xb70] sm:$0xff]
    %v473 = vld [vmem:[#allocation5 + $0xb78] sm:$0xff]
    %v474 = vld [vmem:[#allocation7] sm:$0x1]
    %v476 = vlaneseq
    %v477 = vshrl.u32 %v476, 7
    %v478 = vsub.s32 0, %v477
    %v479 = vrot.slane %v474, %v478
    %481 = vmatprep.subr.mxu0 0.0
    %482 = vmatpush1.msra.mxu0 %v121
    %483 = vmatprep.subr.mxu0 0.0
    %484 = vmatpush1.msra.mxu0 %v120
    %485 = vmatprep.subr.mxu0 0.0
    %486 = vmatpush1.msra.mxu0 %v119
    %487 = vmatprep.subr.mxu0 0.0
    %488 = vmatpush1.msra.mxu0 %v118
    %489 = vmatprep.subr.mxu0 0.0
    %490 = vmatpush1.msra.mxu0 %v117
    %491 = vmatprep.subr.mxu0 0.0
    %492 = vmatpush1.msra.mxu0 %v116
    %493 = vmatprep.subr.mxu0 0.0
    %494 = vmatpush1.msra.mxu0 %v115
    %495 = vmatprep.subr.mxu0 0.0
    %496 = vmatpush1.msra.mxu0 %v114
    %497 = vmatprep.subr.mxu0 0.0
    %498 = vmatpush1.msra.mxu0 %v113
    %499 = vmatprep.subr.mxu0 0.0
    %500 = vmatpush1.msra.mxu0 %v112
    %501 = vmatprep.subr.mxu0 0.0
    %502 = vmatpush1.msra.mxu0 %v111
    %503 = vmatprep.subr.mxu0 0.0
    %504 = vmatpush1.msra.mxu0 %v110
    %505 = vmatprep.subr.mxu0 0.0
    %506 = vmatpush1.msra.mxu0 %v109
    %507 = vmatprep.subr.mxu0 0.0
    %508 = vmatpush1.msra.mxu0 %v108
    %509 = vmatprep.subr.mxu0 0.0
    %510 = vmatpush1.msra.mxu0 %v107
    %511 = vmatprep.subr.mxu0 0.0
    %512 = vmatpush1.msra.mxu0 %v106
    %513 = vmatprep.subr.mxu0 0.0
    %514 = vmatpush2.msra.mxu0 %v137
    %515 = vmatprep.subr.mxu0 0.0
    %516 = vmatpush2.msra.mxu0 %v136
    %517 = vmatprep.subr.mxu0 0.0
    %518 = vmatpush2.msra.mxu0 %v135
    %519 = vmatprep.subr.mxu0 0.0
    %520 = vmatpush2.msra.mxu0 %v134
    %521 = vmatprep.subr.mxu0 0.0
    %522 = vmatpush2.msra.mxu0 %v133
    %523 = vmatprep.subr.mxu0 0.0
    %524 = vmatpush2.msra.mxu0 %v132
    %525 = vmatprep.subr.mxu0 0.0
    %526 = vmatpush2.msra.mxu0 %v131
    %527 = vmatprep.subr.mxu0 0.0
    %528 = vmatpush2.msra.mxu0 %v130
    %529 = vmatprep.subr.mxu0 0.0
    %530 = vmatpush2.msra.mxu0 %v129
    %531 = vmatprep.subr.mxu0 0.0
    %532 = vmatpush2.msra.mxu0 %v128
    %533 = vmatprep.subr.mxu0 0.0
    %534 = vmatpush2.msra.mxu0 %v127
    %535 = vmatprep.subr.mxu0 0.0
    %536 = vmatpush2.msra.mxu0 %v126
    %537 = vmatprep.subr.mxu0 0.0
    %538 = vmatpush2.msra.mxu0 %v125
    %539 = vmatprep.subr.mxu0 0.0
    %540 = vmatpush2.msra.mxu0 %v124
    %541 = vmatprep.subr.mxu0 0.0
    %542 = vmatpush2.msra.mxu0 %v123
    %543 = vmatprep.subr.mxu0 0.0
    %544 = vmatpush2.msra.mxu0 %v122
    %545 = vmatprep.mubr.f32.mxu0 %v84
    %546 = vmatmul.mubr.f32.gmra.mxu0 %v83
    %v547 = vpop.f32.mrf.mxu0
    %v548 = vadd.f32 %v479, %v547
    %v549 = vpop.f32.mrf.mxu0
    %550 = vdwg.mxu0
    %551 = vmatprep.subr.mxu0 0.0
    %552 = vmatpush1.msra.mxu0 %v153
    %553 = vmatprep.subr.mxu0 0.0
    %554 = vmatpush1.msra.mxu0 %v152
    %555 = vmatprep.subr.mxu0 0.0
    %556 = vmatpush1.msra.mxu0 %v151
    %557 = vmatprep.subr.mxu0 0.0
    %558 = vmatpush1.msra.mxu0 %v150
    %559 = vmatprep.subr.mxu0 0.0
    %560 = vmatpush1.msra.mxu0 %v149
    %561 = vmatprep.subr.mxu0 0.0
    %562 = vmatpush1.msra.mxu0 %v148
    %563 = vmatprep.subr.mxu0 0.0
    %564 = vmatpush1.msra.mxu0 %v147
    %565 = vmatprep.subr.mxu0 0.0
    %566 = vmatpush1.msra.mxu0 %v146
    %567 = vmatprep.subr.mxu0 0.0
    %568 = vmatpush1.msra.mxu0 %v145
    %569 = vmatprep.subr.mxu0 0.0
    %570 = vmatpush1.msra.mxu0 %v144
    %571 = vmatprep.subr.mxu0 0.0
    %572 = vmatpush1.msra.mxu0 %v143
    %573 = vmatprep.subr.mxu0 0.0
    %574 = vmatpush1.msra.mxu0 %v142
    %575 = vmatprep.subr.mxu0 0.0
    %576 = vmatpush1.msra.mxu0 %v141
    %577 = vmatprep.subr.mxu0 0.0
    %578 = vmatpush1.msra.mxu0 %v140
    %579 = vmatprep.subr.mxu0 0.0
    %580 = vmatpush1.msra.mxu0 %v139
    %581 = vmatprep.subr.mxu0 0.0
    %582 = vmatpush1.msra.mxu0 %v138
    %583 = vmatprep.subr.mxu0 0.0
    %584 = vmatpush2.msra.mxu0 %v169
    %585 = vmatprep.subr.mxu0 0.0
    %586 = vmatpush2.msra.mxu0 %v168
    %587 = vmatprep.subr.mxu0 0.0
    %588 = vmatpush2.msra.mxu0 %v167
    %589 = vmatprep.subr.mxu0 0.0
    %590 = vmatpush2.msra.mxu0 %v166
    %591 = vmatprep.subr.mxu0 0.0
    %592 = vmatpush2.msra.mxu0 %v165
    %593 = vmatprep.subr.mxu0 0.0
    %594 = vmatpush2.msra.mxu0 %v164
    %595 = vmatprep.subr.mxu0 0.0
    %596 = vmatpush2.msra.mxu0 %v163
    %597 = vmatprep.subr.mxu0 0.0
    %598 = vmatpush2.msra.mxu0 %v162
    %599 = vmatprep.subr.mxu0 0.0
    %600 = vmatpush2.msra.mxu0 %v161
    %601 = vmatprep.subr.mxu0 0.0
    %602 = vmatpush2.msra.mxu0 %v160
    %603 = vmatprep.subr.mxu0 0.0
    %604 = vmatpush2.msra.mxu0 %v159
    %605 = vmatprep.subr.mxu0 0.0
    %606 = vmatpush2.msra.mxu0 %v158
    %607 = vmatprep.subr.mxu0 0.0
    %608 = vmatpush2.msra.mxu0 %v157
    %609 = vmatprep.subr.mxu0 0.0
    %610 = vmatpush2.msra.mxu0 %v156
    %611 = vmatprep.subr.mxu0 0.0
    %612 = vmatpush2.msra.mxu0 %v155
    %613 = vmatprep.subr.mxu0 0.0
    %614 = vmatpush2.msra.mxu0 %v154
    %615 = vmatprep.mubr.f32.mxu0 %v86
    %616 = vmatmul.mubr.f32.gmra.mxu0 %v85
    %v617 = vpop.f32.mrf.mxu0
    %v618 = vadd.f32 %v548, %v617
    %v619 = vpop.f32.mrf.mxu0
    %620 = vdwg.mxu0
    %621 = vmatprep.subr.mxu0 0.0
    %622 = vmatpush1.msra.mxu0 %v185
    %623 = vmatprep.subr.mxu0 0.0
    %624 = vmatpush1.msra.mxu0 %v184
    %625 = vmatprep.subr.mxu0 0.0
    %626 = vmatpush1.msra.mxu0 %v183
    %627 = vmatprep.subr.mxu0 0.0
    %628 = vmatpush1.msra.mxu0 %v182
    %629 = vmatprep.subr.mxu0 0.0
    %630 = vmatpush1.msra.mxu0 %v181
    %631 = vmatprep.subr.mxu0 0.0
    %632 = vmatpush1.msra.mxu0 %v180
    %633 = vmatprep.subr.mxu0 0.0
    %634 = vmatpush1.msra.mxu0 %v179
    %635 = vmatprep.subr.mxu0 0.0
    %636 = vmatpush1.msra.mxu0 %v178
    %637 = vmatprep.subr.mxu0 0.0
    %638 = vmatpush1.msra.mxu0 %v177
    %639 = vmatprep.subr.mxu0 0.0
    %640 = vmatpush1.msra.mxu0 %v176
    %641 = vmatprep.subr.mxu0 0.0
    %642 = vmatpush1.msra.mxu0 %v175
    %643 = vmatprep.subr.mxu0 0.0
    %644 = vmatpush1.msra.mxu0 %v174
    %645 = vmatprep.subr.mxu0 0.0
    %646 = vmatpush1.msra.mxu0 %v173
    %647 = vmatprep.subr.mxu0 0.0
    %648 = vmatpush1.msra.mxu0 %v172
    %649 = vmatprep.subr.mxu0 0.0
    %650 = vmatpush1.msra.mxu0 %v171
    %651 = vmatprep.subr.mxu0 0.0
    %652 = vmatpush1.msra.mxu0 %v170
    %653 = vmatprep.subr.mxu0 0.0
    %654 = vmatpush2.msra.mxu0 %v201
    %655 = vmatprep.subr.mxu0 0.0
    %656 = vmatpush2.msra.mxu0 %v200
    %657 = vmatprep.subr.mxu0 0.0
    %658 = vmatpush2.msra.mxu0 %v199
    %659 = vmatprep.subr.mxu0 0.0
    %660 = vmatpush2.msra.mxu0 %v198
    %661 = vmatprep.subr.mxu0 0.0
    %662 = vmatpush2.msra.mxu0 %v197
    %663 = vmatprep.subr.mxu0 0.0
    %664 = vmatpush2.msra.mxu0 %v196
    %665 = vmatprep.subr.mxu0 0.0
    %666 = vmatpush2.msra.mxu0 %v195
    %667 = vmatprep.subr.mxu0 0.0
    %668 = vmatpush2.msra.mxu0 %v194
    %669 = vmatprep.subr.mxu0 0.0
    %670 = vmatpush2.msra.mxu0 %v193
    %671 = vmatprep.subr.mxu0 0.0
    %672 = vmatpush2.msra.mxu0 %v192
    %673 = vmatprep.subr.mxu0 0.0
    %674 = vmatpush2.msra.mxu0 %v191
    %675 = vmatprep.subr.mxu0 0.0
    %676 = vmatpush2.msra.mxu0 %v190
    %677 = vmatprep.subr.mxu0 0.0
    %678 = vmatpush2.msra.mxu0 %v189
    %679 = vmatprep.subr.mxu0 0.0
    %680 = vmatpush2.msra.mxu0 %v188
    %681 = vmatprep.subr.mxu0 0.0
    %682 = vmatpush2.msra.mxu0 %v187
    %683 = vmatprep.subr.mxu0 0.0
    %684 = vmatpush2.msra.mxu0 %v186
    %685 = vmatprep.mubr.f32.mxu0 %v88
    %686 = vmatmul.mubr.f32.gmra.mxu0 %v87
    %v687 = vpop.f32.mrf.mxu0
    %v688 = vadd.f32 %v618, %v687
    %v689 = vpop.f32.mrf.mxu0
    %690 = vdwg.mxu0
    %691 = vmatprep.subr.mxu0 0.0
    %692 = vmatpush1.msra.mxu0 %v217
    %693 = vmatprep.subr.mxu0 0.0
    %694 = vmatpush1.msra.mxu0 %v216
    %695 = vmatprep.subr.mxu0 0.0
    %696 = vmatpush1.msra.mxu0 %v215
    %697 = vmatprep.subr.mxu0 0.0
    %698 = vmatpush1.msra.mxu0 %v214
    %699 = vmatprep.subr.mxu0 0.0
    %700 = vmatpush1.msra.mxu0 %v213
    %701 = vmatprep.subr.mxu0 0.0
    %702 = vmatpush1.msra.mxu0 %v212
    %703 = vmatprep.subr.mxu0 0.0
    %704 = vmatpush1.msra.mxu0 %v211
    %705 = vmatprep.subr.mxu0 0.0
    %706 = vmatpush1.msra.mxu0 %v210
    %707 = vmatprep.subr.mxu0 0.0
    %708 = vmatpush1.msra.mxu0 %v209
    %709 = vmatprep.subr.mxu0 0.0
    %710 = vmatpush1.msra.mxu0 %v208
    %711 = vmatprep.subr.mxu0 0.0
    %712 = vmatpush1.msra.mxu0 %v207
    %713 = vmatprep.subr.mxu0 0.0
    %714 = vmatpush1.msra.mxu0 %v206
    %715 = vmatprep.subr.mxu0 0.0
    %716 = vmatpush1.msra.mxu0 %v205
    %717 = vmatprep.subr.mxu0 0.0
    %718 = vmatpush1.msra.mxu0 %v204
    %719 = vmatprep.subr.mxu0 0.0
    %720 = vmatpush1.msra.mxu0 %v203
    %721 = vmatprep.subr.mxu0 0.0
    %722 = vmatpush1.msra.mxu0 %v202
    %723 = vmatprep.subr.mxu0 0.0
    %724 = vmatpush2.msra.mxu0 %v233
    %725 = vmatprep.subr.mxu0 0.0
    %726 = vmatpush2.msra.mxu0 %v232
    %727 = vmatprep.subr.mxu0 0.0
    %728 = vmatpush2.msra.mxu0 %v231
    %729 = vmatprep.subr.mxu0 0.0
    %730 = vmatpush2.msra.mxu0 %v230
    %731 = vmatprep.subr.mxu0 0.0
    %732 = vmatpush2.msra.mxu0 %v229
    %733 = vmatprep.subr.mxu0 0.0
    %734 = vmatpush2.msra.mxu0 %v228
    %735 = vmatprep.subr.mxu0 0.0
    %736 = vmatpush2.msra.mxu0 %v227
    %737 = vmatprep.subr.mxu0 0.0
    %738 = vmatpush2.msra.mxu0 %v226
    %739 = vmatprep.subr.mxu0 0.0
    %740 = vmatpush2.msra.mxu0 %v225
    %741 = vmatprep.subr.mxu0 0.0
    %742 = vmatpush2.msra.mxu0 %v224
    %743 = vmatprep.subr.mxu0 0.0
    %744 = vmatpush2.msra.mxu0 %v223
    %745 = vmatprep.subr.mxu0 0.0
    %746 = vmatpush2.msra.mxu0 %v222
    %747 = vmatprep.subr.mxu0 0.0
    %748 = vmatpush2.msra.mxu0 %v221
    %749 = vmatprep.subr.mxu0 0.0
    %750 = vmatpush2.msra.mxu0 %v220
    %751 = vmatprep.subr.mxu0 0.0
    %752 = vmatpush2.msra.mxu0 %v219
    %753 = vmatprep.subr.mxu0 0.0
    %754 = vmatpush2.msra.mxu0 %v218
    %755 = vmatprep.mubr.f32.mxu0 %v90
    %756 = vmatmul.mubr.f32.gmra.mxu0 %v89
    %v757 = vpop.f32.mrf.mxu0
    %v758 = vadd.f32 %v688, %v757
    %v759 = vpop.f32.mrf.mxu0
    %760 = vdwg.mxu0
    %761 = vmatprep.subr.mxu0 0.0
    %762 = vmatpush1.msra.mxu0 %v249
    %763 = vmatprep.subr.mxu0 0.0
    %764 = vmatpush1.msra.mxu0 %v248
    %765 = vmatprep.subr.mxu0 0.0
    %766 = vmatpush1.msra.mxu0 %v247
    %767 = vmatprep.subr.mxu0 0.0
    %768 = vmatpush1.msra.mxu0 %v246
    %769 = vmatprep.subr.mxu0 0.0
    %770 = vmatpush1.msra.mxu0 %v245
    %771 = vmatprep.subr.mxu0 0.0
    %772 = vmatpush1.msra.mxu0 %v244
    %773 = vmatprep.subr.mxu0 0.0
    %774 = vmatpush1.msra.mxu0 %v243
    %775 = vmatprep.subr.mxu0 0.0
    %776 = vmatpush1.msra.mxu0 %v242
    %777 = vmatprep.subr.mxu0 0.0
    %778 = vmatpush1.msra.mxu0 %v241
    %779 = vmatprep.subr.mxu0 0.0
    %780 = vmatpush1.msra.mxu0 %v240
    %781 = vmatprep.subr.mxu0 0.0
    %782 = vmatpush1.msra.mxu0 %v239
    %783 = vmatprep.subr.mxu0 0.0
    %784 = vmatpush1.msra.mxu0 %v238
    %785 = vmatprep.subr.mxu0 0.0
    %786 = vmatpush1.msra.mxu0 %v237
    %787 = vmatprep.subr.mxu0 0.0
    %788 = vmatpush1.msra.mxu0 %v236
    %789 = vmatprep.subr.mxu0 0.0
    %790 = vmatpush1.msra.mxu0 %v235
    %791 = vmatprep.subr.mxu0 0.0
    %792 = vmatpush1.msra.mxu0 %v234
    %793 = vmatprep.subr.mxu0 0.0
    %794 = vmatpush2.msra.mxu0 %v265
    %795 = vmatprep.subr.mxu0 0.0
    %796 = vmatpush2.msra.mxu0 %v264
    %797 = vmatprep.subr.mxu0 0.0
    %798 = vmatpush2.msra.mxu0 %v263
    %799 = vmatprep.subr.mxu0 0.0
    %800 = vmatpush2.msra.mxu0 %v262
    %801 = vmatprep.subr.mxu0 0.0
    %802 = vmatpush2.msra.mxu0 %v261
    %803 = vmatprep.subr.mxu0 0.0
    %804 = vmatpush2.msra.mxu0 %v260
    %805 = vmatprep.subr.mxu0 0.0
    %806 = vmatpush2.msra.mxu0 %v259
    %807 = vmatprep.subr.mxu0 0.0
    %808 = vmatpush2.msra.mxu0 %v258
    %809 = vmatprep.subr.mxu0 0.0
    %810 = vmatpush2.msra.mxu0 %v257
    %811 = vmatprep.subr.mxu0 0.0
    %812 = vmatpush2.msra.mxu0 %v256
    %813 = vmatprep.subr.mxu0 0.0
    %814 = vmatpush2.msra.mxu0 %v255
    %815 = vmatprep.subr.mxu0 0.0
    %816 = vmatpush2.msra.mxu0 %v254
    %817 = vmatprep.subr.mxu0 0.0
    %818 = vmatpush2.msra.mxu0 %v253
    %819 = vmatprep.subr.mxu0 0.0
    %820 = vmatpush2.msra.mxu0 %v252
    %821 = vmatprep.subr.mxu0 0.0
    %822 = vmatpush2.msra.mxu0 %v251
    %823 = vmatprep.subr.mxu0 0.0
    %824 = vmatpush2.msra.mxu0 %v250
    %825 = vmatprep.mubr.f32.mxu0 %v92
    %826 = vmatmul.mubr.f32.gmra.mxu0 %v91
    %v827 = vpop.f32.mrf.mxu0
    %v828 = vadd.f32 %v758, %v827
    %v829 = vpop.f32.mrf.mxu0
    %830 = vdwg.mxu0
    %831 = vmatprep.subr.mxu0 0.0
    %832 = vmatpush1.msra.mxu0 %v281
    %833 = vmatprep.subr.mxu0 0.0
    %834 = vmatpush1.msra.mxu0 %v280
    %835 = vmatprep.subr.mxu0 0.0
    %836 = vmatpush1.msra.mxu0 %v279
    %837 = vmatprep.subr.mxu0 0.0
    %838 = vmatpush1.msra.mxu0 %v278
    %839 = vmatprep.subr.mxu0 0.0
    %840 = vmatpush1.msra.mxu0 %v277
    %841 = vmatprep.subr.mxu0 0.0
    %842 = vmatpush1.msra.mxu0 %v276
    %843 = vmatprep.subr.mxu0 0.0
    %844 = vmatpush1.msra.mxu0 %v275
    %845 = vmatprep.subr.mxu0 0.0
    %846 = vmatpush1.msra.mxu0 %v274
    %847 = vmatprep.subr.mxu0 0.0
    %848 = vmatpush1.msra.mxu0 %v273
    %849 = vmatprep.subr.mxu0 0.0
    %850 = vmatpush1.msra.mxu0 %v272
    %851 = vmatprep.subr.mxu0 0.0
    %852 = vmatpush1.msra.mxu0 %v271
    %853 = vmatprep.subr.mxu0 0.0
    %854 = vmatpush1.msra.mxu0 %v270
    %855 = vmatprep.subr.mxu0 0.0
    %856 = vmatpush1.msra.mxu0 %v269
    %857 = vmatprep.subr.mxu0 0.0
    %858 = vmatpush1.msra.mxu0 %v268
    %859 = vmatprep.subr.mxu0 0.0
    %860 = vmatpush1.msra.mxu0 %v267
    %861 = vmatprep.subr.mxu0 0.0
    %862 = vmatpush1.msra.mxu0 %v266
    %863 = vmatprep.subr.mxu0 0.0
    %864 = vmatpush2.msra.mxu0 %v297
    %865 = vmatprep.subr.mxu0 0.0
    %866 = vmatpush2.msra.mxu0 %v296
    %867 = vmatprep.subr.mxu0 0.0
    %868 = vmatpush2.msra.mxu0 %v295
    %869 = vmatprep.subr.mxu0 0.0
    %870 = vmatpush2.msra.mxu0 %v294
    %871 = vmatprep.subr.mxu0 0.0
    %872 = vmatpush2.msra.mxu0 %v293
    %873 = vmatprep.subr.mxu0 0.0
    %874 = vmatpush2.msra.mxu0 %v292
    %875 = vmatprep.subr.mxu0 0.0
    %876 = vmatpush2.msra.mxu0 %v291
    %877 = vmatprep.subr.mxu0 0.0
    %878 = vmatpush2.msra.mxu0 %v290
    %879 = vmatprep.subr.mxu0 0.0
    %880 = vmatpush2.msra.mxu0 %v289
    %881 = vmatprep.subr.mxu0 0.0
    %882 = vmatpush2.msra.mxu0 %v288
    %883 = vmatprep.subr.mxu0 0.0
    %884 = vmatpush2.msra.mxu0 %v287
    %885 = vmatprep.subr.mxu0 0.0
    %886 = vmatpush2.msra.mxu0 %v286
    %887 = vmatprep.subr.mxu0 0.0
    %888 = vmatpush2.msra.mxu0 %v285
    %889 = vmatprep.subr.mxu0 0.0
    %890 = vmatpush2.msra.mxu0 %v284
    %891 = vmatprep.subr.mxu0 0.0
    %892 = vmatpush2.msra.mxu0 %v283
    %893 = vmatprep.subr.mxu0 0.0
    %894 = vmatpush2.msra.mxu0 %v282
    %895 = vmatprep.mubr.f32.mxu0 %v94
    %896 = vmatmul.mubr.f32.gmra.mxu0 %v93
    %v897 = vpop.f32.mrf.mxu0
    %v898 = vadd.f32 %v828, %v897
    %v899 = vpop.f32.mrf.mxu0
    %900 = vdwg.mxu0
    %901 = vmatprep.subr.mxu0 0.0
    %902 = vmatpush1.msra.mxu0 %v313
    %903 = vmatprep.subr.mxu0 0.0
    %904 = vmatpush1.msra.mxu0 %v312
    %905 = vmatprep.subr.mxu0 0.0
    %906 = vmatpush1.msra.mxu0 %v311
    %907 = vmatprep.subr.mxu0 0.0
    %908 = vmatpush1.msra.mxu0 %v310
    %909 = vmatprep.subr.mxu0 0.0
    %910 = vmatpush1.msra.mxu0 %v309
    %911 = vmatprep.subr.mxu0 0.0
    %912 = vmatpush1.msra.mxu0 %v308
    %913 = vmatprep.subr.mxu0 0.0
    %914 = vmatpush1.msra.mxu0 %v307
    %915 = vmatprep.subr.mxu0 0.0
    %916 = vmatpush1.msra.mxu0 %v306
    %917 = vmatprep.subr.mxu0 0.0
    %918 = vmatpush1.msra.mxu0 %v305
    %919 = vmatprep.subr.mxu0 0.0
    %920 = vmatpush1.msra.mxu0 %v304
    %921 = vmatprep.subr.mxu0 0.0
    %922 = vmatpush1.msra.mxu0 %v303
    %923 = vmatprep.subr.mxu0 0.0
    %924 = vmatpush1.msra.mxu0 %v302
    %925 = vmatprep.subr.mxu0 0.0
    %926 = vmatpush1.msra.mxu0 %v301
    %927 = vmatprep.subr.mxu0 0.0
    %928 = vmatpush1.msra.mxu0 %v300
    %929 = vmatprep.subr.mxu0 0.0
    %930 = vmatpush1.msra.mxu0 %v299
    %931 = vmatprep.subr.mxu0 0.0
    %932 = vmatpush1.msra.mxu0 %v298
    %933 = vmatprep.subr.mxu0 0.0
    %934 = vmatpush2.msra.mxu0 %v329
    %935 = vmatprep.subr.mxu0 0.0
    %936 = vmatpush2.msra.mxu0 %v328
    %937 = vmatprep.subr.mxu0 0.0
    %938 = vmatpush2.msra.mxu0 %v327
    %939 = vmatprep.subr.mxu0 0.0
    %940 = vmatpush2.msra.mxu0 %v326
    %941 = vmatprep.subr.mxu0 0.0
    %942 = vmatpush2.msra.mxu0 %v325
    %943 = vmatprep.subr.mxu0 0.0
    %944 = vmatpush2.msra.mxu0 %v324
    %945 = vmatprep.subr.mxu0 0.0
    %946 = vmatpush2.msra.mxu0 %v323
    %947 = vmatprep.subr.mxu0 0.0
    %948 = vmatpush2.msra.mxu0 %v322
    %949 = vmatprep.subr.mxu0 0.0
    %950 = vmatpush2.msra.mxu0 %v321
    %951 = vmatprep.subr.mxu0 0.0
    %952 = vmatpush2.msra.mxu0 %v320
    %953 = vmatprep.subr.mxu0 0.0
    %954 = vmatpush2.msra.mxu0 %v319
    %955 = vmatprep.subr.mxu0 0.0
    %956 = vmatpush2.msra.mxu0 %v318
    %957 = vmatprep.subr.mxu0 0.0
    %958 = vmatpush2.msra.mxu0 %v317
    %959 = vmatprep.subr.mxu0 0.0
    %960 = vmatpush2.msra.mxu0 %v316
    %961 = vmatprep.subr.mxu0 0.0
    %962 = vmatpush2.msra.mxu0 %v315
    %963 = vmatprep.subr.mxu0 0.0
    %964 = vmatpush2.msra.mxu0 %v314
    %965 = vmatprep.mubr.f32.mxu0 %v96
    %966 = vmatmul.mubr.f32.gmra.mxu0 %v95
    %v967 = vpop.f32.mrf.mxu0
    %v968 = vadd.f32 %v898, %v967
    %v969 = vpop.f32.mrf.mxu0
    %970 = vdwg.mxu0
    %971 = vmatprep.subr.mxu0 0.0
    %972 = vmatpush1.msra.mxu0 %v345
    %973 = vmatprep.subr.mxu0 0.0
    %974 = vmatpush1.msra.mxu0 %v344
    %975 = vmatprep.subr.mxu0 0.0
    %976 = vmatpush1.msra.mxu0 %v343
    %977 = vmatprep.subr.mxu0 0.0
    %978 = vmatpush1.msra.mxu0 %v342
    %979 = vmatprep.subr.mxu0 0.0
    %980 = vmatpush1.msra.mxu0 %v341
    %981 = vmatprep.subr.mxu0 0.0
    %982 = vmatpush1.msra.mxu0 %v340
    %983 = vmatprep.subr.mxu0 0.0
    %984 = vmatpush1.msra.mxu0 %v339
    %985 = vmatprep.subr.mxu0 0.0
    %986 = vmatpush1.msra.mxu0 %v338
    %987 = vmatprep.subr.mxu0 0.0
    %988 = vmatpush1.msra.mxu0 %v337
    %989 = vmatprep.subr.mxu0 0.0
    %990 = vmatpush1.msra.mxu0 %v336
    %991 = vmatprep.subr.mxu0 0.0
    %992 = vmatpush1.msra.mxu0 %v335
    %993 = vmatprep.subr.mxu0 0.0
    %994 = vmatpush1.msra.mxu0 %v334
    %995 = vmatprep.subr.mxu0 0.0
    %996 = vmatpush1.msra.mxu0 %v333
    %997 = vmatprep.subr.mxu0 0.0
    %998 = vmatpush1.msra.mxu0 %v332
    %999 = vmatprep.subr.mxu0 0.0
    %1000 = vmatpush1.msra.mxu0 %v331
    %1001 = vmatprep.subr.mxu0 0.0
    %1002 = vmatpush1.msra.mxu0 %v330
    %1003 = vmatprep.subr.mxu0 0.0
    %1004 = vmatpush2.msra.mxu0 %v361
    %1005 = vmatprep.subr.mxu0 0.0
    %1006 = vmatpush2.msra.mxu0 %v360
    %1007 = vmatprep.subr.mxu0 0.0
    %1008 = vmatpush2.msra.mxu0 %v359
    %1009 = vmatprep.subr.mxu0 0.0
    %1010 = vmatpush2.msra.mxu0 %v358
    %1011 = vmatprep.subr.mxu0 0.0
    %1012 = vmatpush2.msra.mxu0 %v357
    %1013 = vmatprep.subr.mxu0 0.0
    %1014 = vmatpush2.msra.mxu0 %v356
    %1015 = vmatprep.subr.mxu0 0.0
    %1016 = vmatpush2.msra.mxu0 %v355
    %1017 = vmatprep.subr.mxu0 0.0
    %1018 = vmatpush2.msra.mxu0 %v354
    %1019 = vmatprep.subr.mxu0 0.0
    %1020 = vmatpush2.msra.mxu0 %v353
    %1021 = vmatprep.subr.mxu0 0.0
    %1022 = vmatpush2.msra.mxu0 %v352
    %1023 = vmatprep.subr.mxu0 0.0
    %1024 = vmatpush2.msra.mxu0 %v351
    %1025 = vmatprep.subr.mxu0 0.0
    %1026 = vmatpush2.msra.mxu0 %v350
    %1027 = vmatprep.subr.mxu0 0.0
    %1028 = vmatpush2.msra.mxu0 %v349
    %1029 = vmatprep.subr.mxu0 0.0
    %1030 = vmatpush2.msra.mxu0 %v348
    %1031 = vmatprep.subr.mxu0 0.0
    %1032 = vmatpush2.msra.mxu0 %v347
    %1033 = vmatprep.subr.mxu0 0.0
    %1034 = vmatpush2.msra.mxu0 %v346
    %1035 = vmatprep.mubr.f32.mxu0 %v98
    %1036 = vmatmul.mubr.f32.gmra.mxu0 %v97
    %v1037 = vpop.f32.mrf.mxu0
    %v1038 = vadd.f32 %v968, %v1037
    %v1039 = vpop.f32.mrf.mxu0
    %1040 = vdwg.mxu0
    %1041 = vmatprep.subr.mxu0 0.0
    %1042 = vmatpush1.msra.mxu0 %v377
    %1043 = vmatprep.subr.mxu0 0.0
    %1044 = vmatpush1.msra.mxu0 %v376
    %1045 = vmatprep.subr.mxu0 0.0
    %1046 = vmatpush1.msra.mxu0 %v375
    %1047 = vmatprep.subr.mxu0 0.0
    %1048 = vmatpush1.msra.mxu0 %v374
    %1049 = vmatprep.subr.mxu0 0.0
    %1050 = vmatpush1.msra.mxu0 %v373
    %1051 = vmatprep.subr.mxu0 0.0
    %1052 = vmatpush1.msra.mxu0 %v372
    %1053 = vmatprep.subr.mxu0 0.0
    %1054 = vmatpush1.msra.mxu0 %v371
    %1055 = vmatprep.subr.mxu0 0.0
    %1056 = vmatpush1.msra.mxu0 %v370
    %1057 = vmatprep.subr.mxu0 0.0
    %1058 = vmatpush1.msra.mxu0 %v369
    %1059 = vmatprep.subr.mxu0 0.0
    %1060 = vmatpush1.msra.mxu0 %v368
    %1061 = vmatprep.subr.mxu0 0.0
    %1062 = vmatpush1.msra.mxu0 %v367
    %1063 = vmatprep.subr.mxu0 0.0
    %1064 = vmatpush1.msra.mxu0 %v366
    %1065 = vmatprep.subr.mxu0 0.0
    %1066 = vmatpush1.msra.mxu0 %v365
    %1067 = vmatprep.subr.mxu0 0.0
    %1068 = vmatpush1.msra.mxu0 %v364
    %1069 = vmatprep.subr.mxu0 0.0
    %1070 = vmatpush1.msra.mxu0 %v363
    %1071 = vmatprep.subr.mxu0 0.0
    %1072 = vmatpush1.msra.mxu0 %v362
    %1073 = vmatprep.subr.mxu0 0.0
    %1074 = vmatpush2.msra.mxu0 %v393
    %1075 = vmatprep.subr.mxu0 0.0
    %1076 = vmatpush2.msra.mxu0 %v392
    %1077 = vmatprep.subr.mxu0 0.0
    %1078 = vmatpush2.msra.mxu0 %v391
    %1079 = vmatprep.subr.mxu0 0.0
    %1080 = vmatpush2.msra.mxu0 %v390
    %1081 = vmatprep.subr.mxu0 0.0
    %1082 = vmatpush2.msra.mxu0 %v389
    %1083 = vmatprep.subr.mxu0 0.0
    %1084 = vmatpush2.msra.mxu0 %v388
    %1085 = vmatprep.subr.mxu0 0.0
    %1086 = vmatpush2.msra.mxu0 %v387
    %1087 = vmatprep.subr.mxu0 0.0
    %1088 = vmatpush2.msra.mxu0 %v386
    %1089 = vmatprep.subr.mxu0 0.0
    %1090 = vmatpush2.msra.mxu0 %v385
    %1091 = vmatprep.subr.mxu0 0.0
    %1092 = vmatpush2.msra.mxu0 %v384
    %1093 = vmatprep.subr.mxu0 0.0
    %1094 = vmatpush2.msra.mxu0 %v383
    %1095 = vmatprep.subr.mxu0 0.0
    %1096 = vmatpush2.msra.mxu0 %v382
    %1097 = vmatprep.subr.mxu0 0.0
    %1098 = vmatpush2.msra.mxu0 %v381
    %1099 = vmatprep.subr.mxu0 0.0
    %1100 = vmatpush2.msra.mxu0 %v380
    %1101 = vmatprep.subr.mxu0 0.0
    %1102 = vmatpush2.msra.mxu0 %v379
    %1103 = vmatprep.subr.mxu0 0.0
    %1104 = vmatpush2.msra.mxu0 %v378
    %1105 = vmatprep.mubr.f32.mxu0 %v100
    %1106 = vmatmul.mubr.f32.gmra.mxu0 %v99
    %v1107 = vpop.f32.mrf.mxu0
    %v1108 = vadd.f32 %v1038, %v1107
    %v1109 = vpop.f32.mrf.mxu0
    %1110 = vdwg.mxu0
    %1111 = vmatprep.subr.mxu0 0.0
    %1112 = vmatpush1.msra.mxu0 %v409
    %1113 = vmatprep.subr.mxu0 0.0
    %1114 = vmatpush1.msra.mxu0 %v408
    %1115 = vmatprep.subr.mxu0 0.0
    %1116 = vmatpush1.msra.mxu0 %v407
    %1117 = vmatprep.subr.mxu0 0.0
    %1118 = vmatpush1.msra.mxu0 %v406
    %1119 = vmatprep.subr.mxu0 0.0
    %1120 = vmatpush1.msra.mxu0 %v405
    %1121 = vmatprep.subr.mxu0 0.0
    %1122 = vmatpush1.msra.mxu0 %v404
    %1123 = vmatprep.subr.mxu0 0.0
    %1124 = vmatpush1.msra.mxu0 %v403
    %1125 = vmatprep.subr.mxu0 0.0
    %1126 = vmatpush1.msra.mxu0 %v402
    %1127 = vmatprep.subr.mxu0 0.0
    %1128 = vmatpush1.msra.mxu0 %v401
    %1129 = vmatprep.subr.mxu0 0.0
    %1130 = vmatpush1.msra.mxu0 %v400
    %1131 = vmatprep.subr.mxu0 0.0
    %1132 = vmatpush1.msra.mxu0 %v399
    %1133 = vmatprep.subr.mxu0 0.0
    %1134 = vmatpush1.msra.mxu0 %v398
    %1135 = vmatprep.subr.mxu0 0.0
    %1136 = vmatpush1.msra.mxu0 %v397
    %1137 = vmatprep.subr.mxu0 0.0
    %1138 = vmatpush1.msra.mxu0 %v396
    %1139 = vmatprep.subr.mxu0 0.0
    %1140 = vmatpush1.msra.mxu0 %v395
    %1141 = vmatprep.subr.mxu0 0.0
    %1142 = vmatpush1.msra.mxu0 %v394
    %1143 = vmatprep.subr.mxu0 0.0
    %1144 = vmatpush2.msra.mxu0 %v425
    %1145 = vmatprep.subr.mxu0 0.0
    %1146 = vmatpush2.msra.mxu0 %v424
    %1147 = vmatprep.subr.mxu0 0.0
    %1148 = vmatpush2.msra.mxu0 %v423
    %1149 = vmatprep.subr.mxu0 0.0
    %1150 = vmatpush2.msra.mxu0 %v422
    %1151 = vmatprep.subr.mxu0 0.0
    %1152 = vmatpush2.msra.mxu0 %v421
    %1153 = vmatprep.subr.mxu0 0.0
    %1154 = vmatpush2.msra.mxu0 %v420
    %1155 = vmatprep.subr.mxu0 0.0
    %1156 = vmatpush2.msra.mxu0 %v419
    %1157 = vmatprep.subr.mxu0 0.0
    %1158 = vmatpush2.msra.mxu0 %v418
    %1159 = vmatprep.subr.mxu0 0.0
    %1160 = vmatpush2.msra.mxu0 %v417
    %1161 = vmatprep.subr.mxu0 0.0
    %1162 = vmatpush2.msra.mxu0 %v416
    %1163 = vmatprep.subr.mxu0 0.0
    %1164 = vmatpush2.msra.mxu0 %v415
    %1165 = vmatprep.subr.mxu0 0.0
    %1166 = vmatpush2.msra.mxu0 %v414
    %1167 = vmatprep.subr.mxu0 0.0
    %1168 = vmatpush2.msra.mxu0 %v413
    %1169 = vmatprep.subr.mxu0 0.0
    %1170 = vmatpush2.msra.mxu0 %v412
    %1171 = vmatprep.subr.mxu0 0.0
    %1172 = vmatpush2.msra.mxu0 %v411
    %1173 = vmatprep.subr.mxu0 0.0
    %1174 = vmatpush2.msra.mxu0 %v410
    %1175 = vmatprep.mubr.f32.mxu0 %v102
    %1176 = vmatmul.mubr.f32.gmra.mxu0 %v101
    %v1177 = vpop.f32.mrf.mxu0
    %v1178 = vadd.f32 %v1108, %v1177
    %v1179 = vpop.f32.mrf.mxu0
    %1180 = vdwg.mxu0
    %1181 = vmatprep.subr.mxu0 0.0
    %1182 = vmatpush1.msra.mxu0 %v441
    %1183 = vmatprep.subr.mxu0 0.0
    %1184 = vmatpush1.msra.mxu0 %v440
    %1185 = vmatprep.subr.mxu0 0.0
    %1186 = vmatpush1.msra.mxu0 %v439
    %1187 = vmatprep.subr.mxu0 0.0
    %1188 = vmatpush1.msra.mxu0 %v438
    %1189 = vmatprep.subr.mxu0 0.0
    %1190 = vmatpush1.msra.mxu0 %v437
    %1191 = vmatprep.subr.mxu0 0.0
    %1192 = vmatpush1.msra.mxu0 %v436
    %1193 = vmatprep.subr.mxu0 0.0
    %1194 = vmatpush1.msra.mxu0 %v435
    %1195 = vmatprep.subr.mxu0 0.0
    %1196 = vmatpush1.msra.mxu0 %v434
    %1197 = vmatprep.subr.mxu0 0.0
    %1198 = vmatpush1.msra.mxu0 %v433
    %1199 = vmatprep.subr.mxu0 0.0
    %1200 = vmatpush1.msra.mxu0 %v432
    %1201 = vmatprep.subr.mxu0 0.0
    %1202 = vmatpush1.msra.mxu0 %v431
    %1203 = vmatprep.subr.mxu0 0.0
    %1204 = vmatpush1.msra.mxu0 %v430
    %1205 = vmatprep.subr.mxu0 0.0
    %1206 = vmatpush1.msra.mxu0 %v429
    %1207 = vmatprep.subr.mxu0 0.0
    %1208 = vmatpush1.msra.mxu0 %v428
    %1209 = vmatprep.subr.mxu0 0.0
    %1210 = vmatpush1.msra.mxu0 %v427
    %1211 = vmatprep.subr.mxu0 0.0
    %1212 = vmatpush1.msra.mxu0 %v426
    %1213 = vmatprep.subr.mxu0 0.0
    %1214 = vmatpush2.msra.mxu0 %v457
    %1215 = vmatprep.subr.mxu0 0.0
    %1216 = vmatpush2.msra.mxu0 %v456
    %1217 = vmatprep.subr.mxu0 0.0
    %1218 = vmatpush2.msra.mxu0 %v455
    %1219 = vmatprep.subr.mxu0 0.0
    %1220 = vmatpush2.msra.mxu0 %v454
    %1221 = vmatprep.subr.mxu0 0.0
    %1222 = vmatpush2.msra.mxu0 %v453
    %1223 = vmatprep.subr.mxu0 0.0
    %1224 = vmatpush2.msra.mxu0 %v452
    %1225 = vmatprep.subr.mxu0 0.0
    %1226 = vmatpush2.msra.mxu0 %v451
    %1227 = vmatprep.subr.mxu0 0.0
    %1228 = vmatpush2.msra.mxu0 %v450
    %1229 = vmatprep.subr.mxu0 0.0
    %1230 = vmatpush2.msra.mxu0 %v449
    %1231 = vmatprep.subr.mxu0 0.0
    %1232 = vmatpush2.msra.mxu0 %v448
    %1233 = vmatprep.subr.mxu0 0.0
    %1234 = vmatpush2.msra.mxu0 %v447
    %1235 = vmatprep.subr.mxu0 0.0
    %1236 = vmatpush2.msra.mxu0 %v446
    %1237 = vmatprep.subr.mxu0 0.0
    %1238 = vmatpush2.msra.mxu0 %v445
    %1239 = vmatprep.subr.mxu0 0.0
    %1240 = vmatpush2.msra.mxu0 %v444
    %1241 = vmatprep.subr.mxu0 0.0
    %1242 = vmatpush2.msra.mxu0 %v443
    %1243 = vmatprep.subr.mxu0 0.0
    %1244 = vmatpush2.msra.mxu0 %v442
    %1245 = vmatprep.mubr.f32.mxu0 %v104
    %1246 = vmatmul.mubr.f32.gmra.mxu0 %v103
    %v1247 = vpop.f32.mrf.mxu0
    %v1248 = vadd.f32 %v1178, %v1247
    %v1249 = vpop.f32.mrf.mxu0
    %1250 = vdwg.mxu0
    %1251 = vmatprep.subr.mxu0 0.0
    %1252 = vmatpush1.msra.mxu0 %v473
    %1253 = vmatprep.subr.mxu0 0.0
    %1254 = vmatpush1.msra.mxu0 %v472
    %1255 = vmatprep.subr.mxu0 0.0
    %1256 = vmatpush1.msra.mxu0 %v471
    %1257 = vmatprep.subr.mxu0 0.0
    %1258 = vmatpush1.msra.mxu0 %v470
    %1259 = vmatprep.subr.mxu0 0.0
    %1260 = vmatpush1.msra.mxu0 %v469
    %1261 = vmatprep.subr.mxu0 0.0
    %1262 = vmatpush1.msra.mxu0 %v468
    %1263 = vmatprep.subr.mxu0 0.0
    %1264 = vmatpush1.msra.mxu0 %v467
    %1265 = vmatprep.subr.mxu0 0.0
    %1266 = vmatpush1.msra.mxu0 %v466
    %1267 = vmatprep.subr.mxu0 0.0
    %1268 = vmatpush1.msra.mxu0 %v465
    %1269 = vmatprep.subr.mxu0 0.0
    %1270 = vmatpush1.msra.mxu0 %v464
    %1271 = vmatprep.subr.mxu0 0.0
    %1272 = vmatpush1.msra.mxu0 %v463
    %1273 = vmatprep.subr.mxu0 0.0
    %1274 = vmatpush1.msra.mxu0 %v462
    %1275 = vmatprep.subr.mxu0 0.0
    %1276 = vmatpush1.msra.mxu0 %v461
    %1277 = vmatprep.subr.mxu0 0.0
    %1278 = vmatpush1.msra.mxu0 %v460
    %1279 = vmatprep.subr.mxu0 0.0
    %1280 = vmatpush1.msra.mxu0 %v459
    %1281 = vmatprep.subr.mxu0 0.0
    %1282 = vmatpush1.msra.mxu0 %v458
    %1283 = vmatprep.subr.mxu0 0.0
    %1284 = vmatpush2.msra.mxu0 0.0
    %1285 = vmatprep.subr.mxu0 0.0
    %1286 = vmatpush2.msra.mxu0 0.0
    %1287 = vmatprep.subr.mxu0 0.0
    %1288 = vmatpush2.msra.mxu0 0.0
    %1289 = vmatprep.subr.mxu0 0.0
    %1290 = vmatpush2.msra.mxu0 0.0
    %1291 = vmatprep.subr.mxu0 0.0
    %1292 = vmatpush2.msra.mxu0 0.0
    %1293 = vmatprep.subr.mxu0 0.0
    %1294 = vmatpush2.msra.mxu0 0.0
    %1295 = vmatprep.subr.mxu0 0.0
    %1296 = vmatpush2.msra.mxu0 0.0
    %1297 = vmatprep.subr.mxu0 0.0
    %1298 = vmatpush2.msra.mxu0 0.0
    %1299 = vmatprep.subr.mxu0 0.0
    %1300 = vmatpush2.msra.mxu0 0.0
    %1301 = vmatprep.subr.mxu0 0.0
    %1302 = vmatpush2.msra.mxu0 0.0
    %1303 = vmatprep.subr.mxu0 0.0
    %1304 = vmatpush2.msra.mxu0 0.0
    %1305 = vmatprep.subr.mxu0 0.0
    %1306 = vmatpush2.msra.mxu0 0.0
    %1307 = vmatprep.subr.mxu0 0.0
    %1308 = vmatpush2.msra.mxu0 0.0
    %1309 = vmatprep.subr.mxu0 0.0
    %1310 = vmatpush2.msra.mxu0 0.0
    %1311 = vmatprep.subr.mxu0 0.0
    %1312 = vmatpush2.msra.mxu0 0.0
    %1313 = vmatprep.subr.mxu0 0.0
    %1314 = vmatpush2.msra.mxu0 0.0
    %1315 = vmatprep.mubr.f32.mxu0 0.0
    %1316 = vmatmul.mubr.f32.gmra.mxu0 %v105
    %v1317 = vpop.f32.mrf.mxu0
    %v1318 = vadd.f32 %v1248, %v1317
    %v1319 = vpop.f32.mrf.mxu0
    %1320 = vdwg.mxu0
    %v1321 = vmax.f32 %v1318, 0.0
    %v1322 = vld [vmem:[#allocation8] sm:$0xff]
    %v1323 = vld [vmem:[#allocation8 + $0x8] sm:$0xff]
    %v1324 = vld [vmem:[#allocation8 + $0x10] sm:$0xff]
    %v1325 = vld [vmem:[#allocation8 + $0x18] sm:$0xff]
    %v1326 = vld [vmem:[#allocation8 + $0x20] sm:$0xff]
    %v1327 = vld [vmem:[#allocation8 + $0x28] sm:$0xff]
    %v1328 = vld [vmem:[#allocation8 + $0x30] sm:$0xff]
    %v1329 = vld [vmem:[#allocation8 + $0x38] sm:$0xff]
    %v1330 = vld [vmem:[#allocation8 + $0x40] sm:$0xff]
    %v1331 = vld [vmem:[#allocation8 + $0x48] sm:$0xff]
    %v1332 = vld [vmem:[#allocation8 + $0x50] sm:$0xff]
    %v1333 = vld [vmem:[#allocation8 + $0x58] sm:$0xff]
    %v1334 = vld [vmem:[#allocation8 + $0x60] sm:$0xff]
    %v1335 = vld [vmem:[#allocation8 + $0x68] sm:$0xff]
    %v1336 = vld [vmem:[#allocation8 + $0x70] sm:$0xff]
    %v1337 = vld [vmem:[#allocation8 + $0x78] sm:$0xff]
    %v1338 = vld [vmem:[#allocation10] sm:$0x1]
    %v1340 = vlaneseq
    %v1341 = vshrl.u32 %v1340, 7
    %v1342 = vsub.s32 0, %v1341
    %v1343 = vrot.slane %v1338, %v1342
    %1345 = vmatprep.subr.mxu0 0.0
    %1346 = vmatpush1.msra.mxu0 %v1337
    %1347 = vmatprep.subr.mxu0 0.0
    %1348 = vmatpush1.msra.mxu0 %v1336
    %1349 = vmatprep.subr.mxu0 0.0
    %1350 = vmatpush1.msra.mxu0 %v1335
    %1351 = vmatprep.subr.mxu0 0.0
    %1352 = vmatpush1.msra.mxu0 %v1334
    %1353 = vmatprep.subr.mxu0 0.0
    %1354 = vmatpush1.msra.mxu0 %v1333
    %1355 = vmatprep.subr.mxu0 0.0
    %1356 = vmatpush1.msra.mxu0 %v1332
    %1357 = vmatprep.subr.mxu0 0.0
    %1358 = vmatpush1.msra.mxu0 %v1331
    %1359 = vmatprep.subr.mxu0 0.0
    %1360 = vmatpush1.msra.mxu0 %v1330
    %1361 = vmatprep.subr.mxu0 0.0
    %1362 = vmatpush1.msra.mxu0 %v1329
    %1363 = vmatprep.subr.mxu0 0.0
    %1364 = vmatpush1.msra.mxu0 %v1328
    %1365 = vmatprep.subr.mxu0 0.0
    %1366 = vmatpush1.msra.mxu0 %v1327
    %1367 = vmatprep.subr.mxu0 0.0
    %1368 = vmatpush1.msra.mxu0 %v1326
    %1369 = vmatprep.subr.mxu0 0.0
    %1370 = vmatpush1.msra.mxu0 %v1325
    %1371 = vmatprep.subr.mxu0 0.0
    %1372 = vmatpush1.msra.mxu0 %v1324
    %1373 = vmatprep.subr.mxu0 0.0
    %1374 = vmatpush1.msra.mxu0 %v1323
    %1375 = vmatprep.subr.mxu0 0.0
    %1376 = vmatpush1.msra.mxu0 %v1322
    %1377 = vmatprep.subr.mxu0 0.0
    %1378 = vmatpush2.msra.mxu0 0.0
    %1379 = vmatprep.subr.mxu0 0.0
    %1380 = vmatpush2.msra.mxu0 0.0
    %1381 = vmatprep.subr.mxu0 0.0
    %1382 = vmatpush2.msra.mxu0 0.0
    %1383 = vmatprep.subr.mxu0 0.0
    %1384 = vmatpush2.msra.mxu0 0.0
    %1385 = vmatprep.subr.mxu0 0.0
    %1386 = vmatpush2.msra.mxu0 0.0
    %1387 = vmatprep.subr.mxu0 0.0
    %1388 = vmatpush2.msra.mxu0 0.0
    %1389 = vmatprep.subr.mxu0 0.0
    %1390 = vmatpush2.msra.mxu0 0.0
    %1391 = vmatprep.subr.mxu0 0.0
    %1392 = vmatpush2.msra.mxu0 0.0
    %1393 = vmatprep.subr.mxu0 0.0
    %1394 = vmatpush2.msra.mxu0 0.0
    %1395 = vmatprep.subr.mxu0 0.0
    %1396 = vmatpush2.msra.mxu0 0.0
    %1397 = vmatprep.subr.mxu0 0.0
    %1398 = vmatpush2.msra.mxu0 0.0
    %1399 = vmatprep.subr.mxu0 0.0
    %1400 = vmatpush2.msra.mxu0 0.0
    %1401 = vmatprep.subr.mxu0 0.0
    %1402 = vmatpush2.msra.mxu0 0.0
    %1403 = vmatprep.subr.mxu0 0.0
    %1404 = vmatpush2.msra.mxu0 0.0
    %1405 = vmatprep.subr.mxu0 0.0
    %1406 = vmatpush2.msra.mxu0 0.0
    %1407 = vmatprep.subr.mxu0 0.0
    %1408 = vmatpush2.msra.mxu0 0.0
    %1409 = vmatprep.mubr.f32.mxu0 0.0
    %1410 = vmatmul.mubr.f32.gmra.mxu0 %v1321
    %v1411 = vpop.f32.mrf.mxu0
    %v1412 = vadd.f32 %v1343, %v1411
    %v1413 = vpop.f32.mrf.mxu0
    %1414 = vdwg.mxu0
    %1415 = vst [vmem:[#allocation11] sm:$0xff] %v1412
    // Predicated region
    $region42: #{tpu_custom_call.1} parent=1 // pred_check
      _
    $region43: #{tpu_custom_call.1} parent=1 // pred_check_branch
      %1417 = sbr.rel (0) target = $region45
    $region44: #{tpu_custom_call.1} parent=1 // pred_region
      %s1419 = ssub.s32 128, 128
      %1420 = vsyncadd [#allocation4], %s1419
      %s1422 = sshll.u32 [#allocation11], 4
      %s1423 = int_to_ptr.vmem [resolvable:$true] %s1422
      %1425 = dma.vmem_to_hbm [thread:$0]  %s1423, 128, %s5, [#allocation4]
    $region45: #{tpu_custom_call.1} parent=1 // pred_fallthru
      _
    // Predicated region
    $region46: #{tpu_custom_call.1} parent=1 // pred_check
      _
    $region47: #{tpu_custom_call.1} parent=1 // pred_check_branch
      %1427 = sbr.rel (0) target = $region49
    $region48: #{tpu_custom_call.1} parent=1 // pred_region
      %1428 = dma.done [#allocation4], 128
    $region49: #{tpu_custom_call.1} parent=1 // pred_fallthru
      _
    %1429 = vsyncpa [#allocation3], 1
    %1430 = vsyncpa [#allocation6], 1
    %1431 = vsyncpa [#allocation9], 1
    %1432 = vsyncpa [#allocation4], 1

</llo_original>
